<compile_context>
chip_gen: v5e
topology: v5e:2x2
jax: 0.10.0
libtpu: 0.0.40
codegen_flags: <defaults>
</compile_context>

<pallas_src>
import functools

import jax
import jax.numpy as jnp
from jax.experimental import pallas as pl
from jax.experimental.pallas import tpu as pltpu

BN_EPS = 1e-5
LEAKY_SLOPE = 0.01
LANE = 128


def _round_up(n, m):
    return ((n + m - 1) // m) * m


def _cdiv(a, b):
    return (a + b - 1) // b


# ------------------------------ fused kernel ------------------------------

def _ae_fused_kernel(fused, zsplit, act_enc, act_cls, act_dec, has_cls,
                     x_ref, *refs):
    """Whole autoencoder forward for one batch tile.

    Weight refs (w, shift) pairs appear in order: encoder, [fused z-layer],
    classifier-rest, decoder-rest; followed by the output refs (recon[, cls]).
    Each layer is  act( bf16(h) @ w_bf16  + shift_f32 )  with BN/bias pre-folded.
    The per-layer Python loop fully unrolls into straight-line code.
    """
    n_pairs = len(act_enc) + (1 if fused else 0) + len(act_cls) + len(act_dec)
    w_refs = refs[:2 * n_pairs]
    recon_ref = refs[2 * n_pairs]
    cls_ref = refs[2 * n_pairs + 1] if has_cls else None

    pos = [0]

    def layer(h, act):
        w = w_refs[pos[0]][...]        # bf16 [din_pad, dout_pad]
        s = w_refs[pos[0] + 1][...]    # f32  [1, dout_pad]
        pos[0] += 2
        y = jnp.dot(h.astype(jnp.bfloat16), w,
                    preferred_element_type=jnp.float32) + s
        if act:
            y = jnp.where(y >= 0.0, y, LEAKY_SLOPE * y)   # LeakyReLU(0.01)
        return y

    # ---- encoder (ends with latent layer: Linear + BN, no activation) ----
    h = x_ref[...].astype(jnp.float32)
    for a in act_enc:
        h = layer(h, a)
    z = h

    # ---- fused z-consumers: first decoder layer || first classifier layer ----
    if fused:
        y = layer(z, True)             # both halves have LeakyReLU
        c = y[:, zsplit:]
        h = y[:, :zsplit]
    else:
        c = z
        h = z

    # ---- classifier head first (short live range; frees its vregs early) ----
    if has_cls:
        for a in act_cls:
            c = layer(c, a)
        cls_ref[...] = c.astype(cls_ref.dtype)
        del c

    # ---- remaining decoder layers ----
    for a in act_dec:
        h = layer(h, a)
    recon_ref[...] = h.astype(recon_ref.dtype)


# ------------------------- parameter construction -------------------------

def _init_linear(key, din, dout):
    kw, kb = jax.random.split(key)
    bound = 1.0 / jnp.sqrt(jnp.float32(din))
    w = jax.random.uniform(kw, (din, dout), jnp.float32, -bound, bound)
    b = jax.random.uniform(kb, (1, dout), jnp.float32, -bound, bound)
    return w, b


def _init_bn(key, dim):
    kg, kb, km, kv = jax.random.split(key, 4)
    gamma = 1.0 + 0.05 * jax.random.normal(kg, (1, dim), jnp.float32)
    beta = 0.05 * jax.random.normal(kb, (1, dim), jnp.float32)
    mean = 0.05 * jax.random.normal(km, (1, dim), jnp.float32)
    var = 1.0 + 0.1 * jax.random.uniform(kv, (1, dim), jnp.float32)
    return gamma, beta, mean, var


def _pad2(a, rows, cols):
    out = jnp.zeros((rows, cols), a.dtype)
    return out.at[:a.shape[0], :a.shape[1]].set(a)


def build_autoencoder_params(key, input_dim, encoder_dims, latent_dim,
                             decoder_dims=None, output_dim=None):
    """Eval-mode params: BN + bias folded into (w, shift); bf16 weights, f32 shifts.

    Output feature dims are zero-padded to multiples of 128 (lane-dense, padded
    lanes stay exactly 0 through LeakyReLU).  The first encoder weight keeps its
    true row count so x needs no wrapper-side feature padding.
    """
    if decoder_dims is None:
        decoder_dims = list(encoder_dims[::-1])
    has_cls = output_dim is not None
    fused = has_cls and len(decoder_dims) > 0

    n_layers = len(encoder_dims) + 1 + len(decoder_dims) + 1 + (2 if has_cls else 0)
    keys = iter(jax.random.split(key, 4 * n_layers + 8))

    def folded(din, dout, with_bn):
        w, b = _init_linear(next(keys), din, dout)
        if with_bn:
            gamma, beta, mean, var = _init_bn(next(keys), dout)
            scale = gamma / jnp.sqrt(var + BN_EPS)
            w = w * scale                                  # fold BN scale into W
            shift = (b - mean) * scale + beta              # fold bias + BN shift
        else:
            shift = b
        return w, shift

    def pack(w, shift, rows_pad, cols_pad):
        return (_pad2(w, rows_pad, cols_pad).astype(jnp.bfloat16),
                _pad2(shift, 1, cols_pad).astype(jnp.float32))

    # ---- encoder (includes latent layer) ----
    enc, act_enc = [], []
    prev, prev_pad = input_dim, input_dim            # first layer: true Din rows
    for d in encoder_dims:
        w, s = folded(prev, d, True)
        enc.append(pack(w, s, prev_pad, _round_up(d, LANE)))
        act_enc.append(True)
        prev, prev_pad = d, _round_up(d, LANE)
    w, s = folded(prev, latent_dim, True)
    enc.append(pack(w, s, prev_pad, _round_up(latent_dim, LANE)))
    act_enc.append(False)
    latent_pad = _round_up(latent_dim, LANE)

    # ---- raw decoder / classifier layer definitions ----
    dec_defs = []
    prev = latent_dim
    for d in decoder_dims:
        dec_defs.append((prev, d, True, True))
        prev = d
    dec_defs.append((prev, input_dim, False, False))

    cls_defs = []
    if has_cls:
        cls_defs.append((latent_dim, 64, False, True))
        cls_defs.append((64, output_dim, False, False))

    zfused, zsplit = None, 0
    dec, act_dec = [], []
    cls, act_cls = [], []

    if fused:
        # Concatenate first-decoder and first-classifier weights along N -> one
        # wider matmul from z (both halves are followed by LeakyReLU).
        din_d, dout_d, bn_d, _ = dec_defs[0]
        w_d, s_d = folded(din_d, dout_d, bn_d)
        din_c, dout_c, bn_c, _ = cls_defs[0]
        w_c, s_c = folded(din_c, dout_c, bn_c)
        dec0_pad = _round_up(dout_d, LANE)
        cls0_pad = _round_up(dout_c, LANE)
        wz = jnp.concatenate([_pad2(w_d, latent_dim, dec0_pad),
                              _pad2(w_c, latent_dim, cls0_pad)], axis=1)
        sz = jnp.concatenate([_pad2(s_d, 1, dec0_pad),
                              _pad2(s_c, 1, cls0_pad)], axis=1)
        zfused = (_pad2(wz, latent_pad, dec0_pad + cls0_pad).astype(jnp.bfloat16),
                  sz.astype(jnp.float32))
        zsplit = dec0_pad
        dec_defs = dec_defs[1:]
        cls_defs = cls_defs[1:]
        prev_dec_pad, prev_cls_pad = dec0_pad, cls0_pad
    else:
        prev_dec_pad, prev_cls_pad = latent_pad, latent_pad

    for (din, dout, bn, a) in cls_defs:
        w, s = folded(din, dout, bn)
        cls.append(pack(w, s, prev_cls_pad, _round_up(dout, LANE)))
        act_cls.append(a)
        prev_cls_pad = _round_up(dout, LANE)

    for (din, dout, bn, a) in dec_defs:
        w, s = folded(din, dout, bn)
        dec.append(pack(w, s, prev_dec_pad, _round_up(dout, LANE)))
        act_dec.append(a)
        prev_dec_pad = _round_up(dout, LANE)

    return {
        "enc": enc, "act_enc": tuple(act_enc),
        "zfused": zfused, "zsplit": zsplit,
        "cls": cls, "act_cls": tuple(act_cls),
        "dec": dec, "act_dec": tuple(act_dec),
        "has_cls": has_cls,
        "input_dim": input_dim,
        "output_dim": output_dim,
        "recon_pad": _round_up(input_dim, LANE),
        "cls_pad": _round_up(output_dim, LANE) if has_cls else None,
    }


# --------------------------------- forward --------------------------------

def autoencoder_forward(params, x, *, batch_tile=256):
    """Matches Autoencoder.forward: returns (x_recon, class_pred). One pallas_call."""
    B, Din = x.shape
    assert Din == params["input_dim"]
    has_cls = params["has_cls"]
    fused = params["zfused"] is not None

    # Batch tiling: >=2 tiles whenever B >= 16 (v7x dual-TC), tile rounded to 8
    # sublanes, chosen to minimize batch padding.
    n_tiles = max(_cdiv(B, batch_tile), 2 if B >= 16 else 1)
    tb = _round_up(_cdiv(B, n_tiles), 8)
    b_pad = _round_up(B, tb)
    grid = (b_pad // tb,)

    x_in = x.astype(jnp.float32)
    if b_pad != B:                              # pad batch rows only (feature dim untouched)
        x_in = jnp.zeros((b_pad, Din), jnp.float32).at[:B].set(x_in)

    # Weight (w, shift) pairs in kernel order: encoder, fused-z, cls-rest, dec-rest.
    pairs = list(params["enc"])
    if fused:
        pairs.append(params["zfused"])
    pairs += list(params["cls"]) + list(params["dec"])
    flat_args = [a for pair in pairs for a in pair]

    recon_pad = params["recon_pad"]
    cls_pad = params["cls_pad"]

    out_shape = [jax.ShapeDtypeStruct((b_pad, recon_pad), jnp.float32)]
    out_specs = [pl.BlockSpec((tb, recon_pad), lambda i: (i, 0))]
    if has_cls:
        out_shape.append(jax.ShapeDtypeStruct((b_pad, cls_pad), jnp.float32))
        out_specs.append(pl.BlockSpec((tb, cls_pad), lambda i: (i, 0)))

    kernel = functools.partial(
        _ae_fused_kernel, fused, params["zsplit"],
        params["act_enc"], params["act_cls"], params["act_dec"], has_cls)

    # Cost estimate + explicit VMEM budget (resident weights + tiles + headroom).
    flops = 2 * b_pad * sum(int(w.shape[0]) * int(w.shape[1]) for (w, _) in pairs)
    param_bytes = sum(int(w.size) * 2 + int(s.size) * 4 for (w, s) in pairs)
    io_bytes = 4 * (int(x_in.size) + sum(int(s.shape[0]) * int(s.shape[1])
                                         for s in out_shape))
    max_width = max([recon_pad, Din, cls_pad or 0]
                    + [int(w.shape[1]) for (w, _) in pairs])
    tile_bytes = 4 * tb * (Din + recon_pad + (cls_pad or 0) + 4 * max_width)
    vmem_limit = int(min(64 << 20, max(32 << 20,
                                       2 * param_bytes + 2 * tile_bytes + (4 << 20))))

    def run(single_buffer_weights):
        in_specs = [pl.BlockSpec((tb, Din), lambda i: (i, 0))]
        for (w, s) in pairs:
            if single_buffer_weights:
                # Constant block index -> single-buffered, VMEM-resident weights.
                in_specs.append(pl.BlockSpec(w.shape, lambda i: (0, 0),
                                             pipeline_mode=pl.Buffered(1)))
                in_specs.append(pl.BlockSpec(s.shape, lambda i: (0, 0),
                                             pipeline_mode=pl.Buffered(1)))
            else:
                in_specs.append(pl.BlockSpec(w.shape, lambda i: (0, 0)))
                in_specs.append(pl.BlockSpec(s.shape, lambda i: (0, 0)))
        return pl.pallas_call(
            kernel,
            out_shape=out_shape,
            grid=grid,
            in_specs=in_specs,
            out_specs=out_specs,
            compiler_params=pltpu.CompilerParams(
                dimension_semantics=("parallel",),     # batch tiles shard across cores
                vmem_limit_bytes=vmem_limit),
            cost_estimate=pl.CostEstimate(
                flops=flops, transcendentals=0,
                bytes_accessed=param_bytes + io_bytes),
        )(x_in, *flat_args)

    try:
        outs = run(True)
    except Exception:
        # Older JAX without BlockSpec.pipeline_mode / Buffered(1): default buffering.
        outs = run(False)

    x_recon = outs[0][:B, :params["input_dim"]]
    class_pred = outs[1][:B, :params["output_dim"]] if has_cls else None
    return x_recon, class_pred


# ------------------------------ pure-JAX reference ------------------------------

def _reference_forward(params, x):
    """Same math (bf16 operands, f32 accumulate/epilogue) in plain JAX."""
    def layer(h, w, s, act):
        y = jnp.dot(h.astype(jnp.bfloat16), w,
                    preferred_element_type=jnp.float32) + s
        if act:
            y = jnp.where(y >= 0.0, y, LEAKY_SLOPE * y)
        return y

    h = x.astype(jnp.float32)
    for (w, s), a in zip(params["enc"], params["act_enc"]):
        h = layer(h, w, s, a)
    z = h

    if params["zfused"] is not None:
        wz, sz = params["zfused"]
        y = layer(z, wz, sz, True)
        c = y[:, params["zsplit"]:]
        h = y[:, :params["zsplit"]]
    else:
        c, h = z, z

    cls_out = None
    if params["has_cls"]:
        for (w, s), a in zip(params["cls"], params["act_cls"]):
            c = layer(c, w, s, a)
        cls_out = c[:, :params["output_dim"]]

    for (w, s), a in zip(params["dec"], params["act_dec"]):
        h = layer(h, w, s, a)
    return h[:, :params["input_dim"]], cls_out


if __name__ == "__main__":
    key = jax.random.PRNGKey(0)
    k_param, k_x = jax.random.split(key)

    batch = 8
    input_dim = 16
    encoder_dims = [32, 16]
    latent_dim = 8
    output_dim = 4

    params = build_autoencoder_params(
        k_param, input_dim, encoder_dims, latent_dim, output_dim=output_dim)

    x = jax.random.normal(k_x, (batch, input_dim), jnp.float32)

    x_recon, class_pred = autoencoder_forward(params, x)
    jax.block_until_ready(x_recon)
    jax.block_until_ready(class_pred)

    assert x_recon.shape == (batch, input_dim)
    assert class_pred.shape == (batch, output_dim)

    ref_recon, ref_cls = _reference_forward(params, x)
    assert jnp.allclose(x_recon, ref_recon, rtol=2e-2, atol=2e-2)
    assert jnp.allclose(class_pred, ref_cls, rtol=2e-2, atol=2e-2)

    print("KERNEL_OK")
</pallas_src>

<mosaic_0001>
module attributes {stable_mosaic.version = 11 : i64} {
  func.func @_ae_fused_kernel(%arg0: i32, %arg1: memref<8x16xf32, #tpu.memory_space<vmem>>, %arg2: memref<16x128xbf16, #tpu.memory_space<vmem>>, %arg3: memref<1x128xf32, #tpu.memory_space<vmem>>, %arg4: memref<128x128xbf16, #tpu.memory_space<vmem>>, %arg5: memref<1x128xf32, #tpu.memory_space<vmem>>, %arg6: memref<128x128xbf16, #tpu.memory_space<vmem>>, %arg7: memref<1x128xf32, #tpu.memory_space<vmem>>, %arg8: memref<128x256xbf16, #tpu.memory_space<vmem>>, %arg9: memref<1x256xf32, #tpu.memory_space<vmem>>, %arg10: memref<128x128xbf16, #tpu.memory_space<vmem>>, %arg11: memref<1x128xf32, #tpu.memory_space<vmem>>, %arg12: memref<128x128xbf16, #tpu.memory_space<vmem>>, %arg13: memref<1x128xf32, #tpu.memory_space<vmem>>, %arg14: memref<128x128xbf16, #tpu.memory_space<vmem>>, %arg15: memref<1x128xf32, #tpu.memory_space<vmem>>, %arg16: memref<8x128xf32, #tpu.memory_space<vmem>>, %arg17: memref<8x128xf32, #tpu.memory_space<vmem>>) attributes {dimension_semantics = [#tpu.dimension_semantics<parallel>], iteration_bounds = array<i64: 1>, scalar_prefetch = 0 : i64, scratch_operands = 0 : i64, tpu.core_type = #tpu.core_type<tc>, window_params = [{transform_indices = @transform_0, window_bounds = array<i64: 8, 16>}, {pipeline_mode = #tpu.pipeline_mode<synchronous>, transform_indices = @transform_1, window_bounds = array<i64: 16, 128>}, {pipeline_mode = #tpu.pipeline_mode<synchronous>, transform_indices = @transform_2, window_bounds = array<i64: 1, 128>}, {pipeline_mode = #tpu.pipeline_mode<synchronous>, transform_indices = @transform_3, window_bounds = array<i64: 128, 128>}, {pipeline_mode = #tpu.pipeline_mode<synchronous>, transform_indices = @transform_4, window_bounds = array<i64: 1, 128>}, {pipeline_mode = #tpu.pipeline_mode<synchronous>, transform_indices = @transform_5, window_bounds = array<i64: 128, 128>}, {pipeline_mode = #tpu.pipeline_mode<synchronous>, transform_indices = @transform_6, window_bounds = array<i64: 1, 128>}, {pipeline_mode = #tpu.pipeline_mode<synchronous>, transform_indices = @transform_7, window_bounds = array<i64: 128, 256>}, {pipeline_mode = #tpu.pipeline_mode<synchronous>, transform_indices = @transform_8, window_bounds = array<i64: 1, 256>}, {pipeline_mode = #tpu.pipeline_mode<synchronous>, transform_indices = @transform_9, window_bounds = array<i64: 128, 128>}, {pipeline_mode = #tpu.pipeline_mode<synchronous>, transform_indices = @transform_10, window_bounds = array<i64: 1, 128>}, {pipeline_mode = #tpu.pipeline_mode<synchronous>, transform_indices = @transform_11, window_bounds = array<i64: 128, 128>}, {pipeline_mode = #tpu.pipeline_mode<synchronous>, transform_indices = @transform_12, window_bounds = array<i64: 1, 128>}, {pipeline_mode = #tpu.pipeline_mode<synchronous>, transform_indices = @transform_13, window_bounds = array<i64: 128, 128>}, {pipeline_mode = #tpu.pipeline_mode<synchronous>, transform_indices = @transform_14, window_bounds = array<i64: 1, 128>}, {transform_indices = @transform_15, window_bounds = array<i64: 8, 128>}, {transform_indices = @transform_16, window_bounds = array<i64: 8, 128>}]} {
    %c0 = arith.constant 0 : index
    %c0_0 = arith.constant 0 : index
    %0 = vector.load %arg1[%c0, %c0_0] : memref<8x16xf32, #tpu.memory_space<vmem>>, vector<8x16xf32>
    %c0_1 = arith.constant 0 : index
    %c0_2 = arith.constant 0 : index
    %1 = vector.load %arg2[%c0_1, %c0_2] : memref<16x128xbf16, #tpu.memory_space<vmem>>, vector<16x128xbf16>
    %c0_3 = arith.constant 0 : index
    %c0_4 = arith.constant 0 : index
    %2 = vector.load %arg3[%c0_3, %c0_4] : memref<1x128xf32, #tpu.memory_space<vmem>>, vector<1x128xf32>
    %3 = arith.truncf %0 : vector<8x16xf32> to vector<8x16xbf16>
    %cst = arith.constant dense<0.000000e+00> : vector<8x128xf32>
    %4 = tpu.matmul %3, %1, %cst {dimension_numbers = #tpu.dot_dimension_numbers<[1], [0], [0], [1], [0, 0, 1, 1], [], []>} : vector<8x16xbf16>, vector<16x128xbf16>, vector<8x128xf32> -> vector<8x128xf32>
    %5 = vector.broadcast %2 : vector<1x128xf32> to vector<8x128xf32>
    %6 = arith.addf %4, %5 : vector<8x128xf32>
    %cst_5 = arith.constant 0.000000e+00 : f32
    %7 = vector.broadcast %cst_5 : f32 to vector<8x128xf32>
    %8 = arith.cmpf oge, %6, %7 : vector<8x128xf32>
    %cst_6 = arith.constant 0.00999999977 : f32
    %9 = vector.broadcast %cst_6 : f32 to vector<8x128xf32>
    %10 = arith.mulf %9, %6 : vector<8x128xf32>
    %11 = arith.select %8, %6, %10 : vector<8x128xi1>, vector<8x128xf32>
    %c0_7 = arith.constant 0 : index
    %c0_8 = arith.constant 0 : index
    %12 = vector.load %arg4[%c0_7, %c0_8] : memref<128x128xbf16, #tpu.memory_space<vmem>>, vector<128x128xbf16>
    %c0_9 = arith.constant 0 : index
    %c0_10 = arith.constant 0 : index
    %13 = vector.load %arg5[%c0_9, %c0_10] : memref<1x128xf32, #tpu.memory_space<vmem>>, vector<1x128xf32>
    %14 = arith.truncf %11 : vector<8x128xf32> to vector<8x128xbf16>
    %cst_11 = arith.constant dense<0.000000e+00> : vector<8x128xf32>
    %15 = tpu.matmul %14, %12, %cst_11 {dimension_numbers = #tpu.dot_dimension_numbers<[1], [0], [0], [1], [0, 0, 1, 1], [], []>} : vector<8x128xbf16>, vector<128x128xbf16>, vector<8x128xf32> -> vector<8x128xf32>
    %16 = vector.broadcast %13 : vector<1x128xf32> to vector<8x128xf32>
    %17 = arith.addf %15, %16 : vector<8x128xf32>
    %cst_12 = arith.constant 0.000000e+00 : f32
    %18 = vector.broadcast %cst_12 : f32 to vector<8x128xf32>
    %19 = arith.cmpf oge, %17, %18 : vector<8x128xf32>
    %cst_13 = arith.constant 0.00999999977 : f32
    %20 = vector.broadcast %cst_13 : f32 to vector<8x128xf32>
    %21 = arith.mulf %20, %17 : vector<8x128xf32>
    %22 = arith.select %19, %17, %21 : vector<8x128xi1>, vector<8x128xf32>
    %c0_14 = arith.constant 0 : index
    %c0_15 = arith.constant 0 : index
    %23 = vector.load %arg6[%c0_14, %c0_15] : memref<128x128xbf16, #tpu.memory_space<vmem>>, vector<128x128xbf16>
    %c0_16 = arith.constant 0 : index
    %c0_17 = arith.constant 0 : index
    %24 = vector.load %arg7[%c0_16, %c0_17] : memref<1x128xf32, #tpu.memory_space<vmem>>, vector<1x128xf32>
    %25 = arith.truncf %22 : vector<8x128xf32> to vector<8x128xbf16>
    %cst_18 = arith.constant dense<0.000000e+00> : vector<8x128xf32>
    %26 = tpu.matmul %25, %23, %cst_18 {dimension_numbers = #tpu.dot_dimension_numbers<[1], [0], [0], [1], [0, 0, 1, 1], [], []>} : vector<8x128xbf16>, vector<128x128xbf16>, vector<8x128xf32> -> vector<8x128xf32>
    %27 = vector.broadcast %24 : vector<1x128xf32> to vector<8x128xf32>
    %28 = arith.addf %26, %27 : vector<8x128xf32>
    %c0_19 = arith.constant 0 : index
    %c0_20 = arith.constant 0 : index
    %29 = vector.load %arg8[%c0_19, %c0_20] : memref<128x256xbf16, #tpu.memory_space<vmem>>, vector<128x256xbf16>
    %c0_21 = arith.constant 0 : index
    %c0_22 = arith.constant 0 : index
    %30 = vector.load %arg9[%c0_21, %c0_22] : memref<1x256xf32, #tpu.memory_space<vmem>>, vector<1x256xf32>
    %31 = arith.truncf %28 : vector<8x128xf32> to vector<8x128xbf16>
    %cst_23 = arith.constant dense<0.000000e+00> : vector<8x256xf32>
    %32 = tpu.matmul %31, %29, %cst_23 {dimension_numbers = #tpu.dot_dimension_numbers<[1], [0], [0], [1], [0, 0, 1, 1], [], []>} : vector<8x128xbf16>, vector<128x256xbf16>, vector<8x256xf32> -> vector<8x256xf32>
    %33 = vector.broadcast %30 : vector<1x256xf32> to vector<8x256xf32>
    %34 = arith.addf %32, %33 : vector<8x256xf32>
    %cst_24 = arith.constant 0.000000e+00 : f32
    %35 = vector.broadcast %cst_24 : f32 to vector<8x256xf32>
    %36 = arith.cmpf oge, %34, %35 : vector<8x256xf32>
    %cst_25 = arith.constant 0.00999999977 : f32
    %37 = vector.broadcast %cst_25 : f32 to vector<8x256xf32>
    %38 = arith.mulf %37, %34 : vector<8x256xf32>
    %39 = arith.select %36, %34, %38 : vector<8x256xi1>, vector<8x256xf32>
    %40 = vector.extract_strided_slice %39 {offsets = [0, 128], sizes = [8, 128], strides = [1, 1]} : vector<8x256xf32> to vector<8x128xf32>
    %41 = vector.extract_strided_slice %39 {offsets = [0, 0], sizes = [8, 128], strides = [1, 1]} : vector<8x256xf32> to vector<8x128xf32>
    %c0_26 = arith.constant 0 : index
    %c0_27 = arith.constant 0 : index
    %42 = vector.load %arg10[%c0_26, %c0_27] : memref<128x128xbf16, #tpu.memory_space<vmem>>, vector<128x128xbf16>
    %c0_28 = arith.constant 0 : index
    %c0_29 = arith.constant 0 : index
    %43 = vector.load %arg11[%c0_28, %c0_29] : memref<1x128xf32, #tpu.memory_space<vmem>>, vector<1x128xf32>
    %44 = arith.truncf %40 : vector<8x128xf32> to vector<8x128xbf16>
    %cst_30 = arith.constant dense<0.000000e+00> : vector<8x128xf32>
    %45 = tpu.matmul %44, %42, %cst_30 {dimension_numbers = #tpu.dot_dimension_numbers<[1], [0], [0], [1], [0, 0, 1, 1], [], []>} : vector<8x128xbf16>, vector<128x128xbf16>, vector<8x128xf32> -> vector<8x128xf32>
    %46 = vector.broadcast %43 : vector<1x128xf32> to vector<8x128xf32>
    %47 = arith.addf %45, %46 : vector<8x128xf32>
    %c0_31 = arith.constant 0 : index
    %c0_32 = arith.constant 0 : index
    %48 = vector.load %arg17[%c0_31, %c0_32] : memref<8x128xf32, #tpu.memory_space<vmem>>, vector<8x128xf32>
    tpu.vector_store %arg17[%c0_31, %c0_32], %47 {strides = array<i32>} : memref<8x128xf32, #tpu.memory_space<vmem>>, vector<8x128xf32>,
    %c0_33 = arith.constant 0 : index
    %c0_34 = arith.constant 0 : index
    %49 = vector.load %arg12[%c0_33, %c0_34] : memref<128x128xbf16, #tpu.memory_space<vmem>>, vector<128x128xbf16>
    %c0_35 = arith.constant 0 : index
    %c0_36 = arith.constant 0 : index
    %50 = vector.load %arg13[%c0_35, %c0_36] : memref<1x128xf32, #tpu.memory_space<vmem>>, vector<1x128xf32>
    %51 = arith.truncf %41 : vector<8x128xf32> to vector<8x128xbf16>
    %cst_37 = arith.constant dense<0.000000e+00> : vector<8x128xf32>
    %52 = tpu.matmul %51, %49, %cst_37 {dimension_numbers = #tpu.dot_dimension_numbers<[1], [0], [0], [1], [0, 0, 1, 1], [], []>} : vector<8x128xbf16>, vector<128x128xbf16>, vector<8x128xf32> -> vector<8x128xf32>
    %53 = vector.broadcast %50 : vector<1x128xf32> to vector<8x128xf32>
    %54 = arith.addf %52, %53 : vector<8x128xf32>
    %cst_38 = arith.constant 0.000000e+00 : f32
    %55 = vector.broadcast %cst_38 : f32 to vector<8x128xf32>
    %56 = arith.cmpf oge, %54, %55 : vector<8x128xf32>
    %cst_39 = arith.constant 0.00999999977 : f32
    %57 = vector.broadcast %cst_39 : f32 to vector<8x128xf32>
    %58 = arith.mulf %57, %54 : vector<8x128xf32>
    %59 = arith.select %56, %54, %58 : vector<8x128xi1>, vector<8x128xf32>
    %c0_40 = arith.constant 0 : index
    %c0_41 = arith.constant 0 : index
    %60 = vector.load %arg14[%c0_40, %c0_41] : memref<128x128xbf16, #tpu.memory_space<vmem>>, vector<128x128xbf16>
    %c0_42 = arith.constant 0 : index
    %c0_43 = arith.constant 0 : index
    %61 = vector.load %arg15[%c0_42, %c0_43] : memref<1x128xf32, #tpu.memory_space<vmem>>, vector<1x128xf32>
    %62 = arith.truncf %59 : vector<8x128xf32> to vector<8x128xbf16>
    %cst_44 = arith.constant dense<0.000000e+00> : vector<8x128xf32>
    %63 = tpu.matmul %62, %60, %cst_44 {dimension_numbers = #tpu.dot_dimension_numbers<[1], [0], [0], [1], [0, 0, 1, 1], [], []>} : vector<8x128xbf16>, vector<128x128xbf16>, vector<8x128xf32> -> vector<8x128xf32>
    %64 = vector.broadcast %61 : vector<1x128xf32> to vector<8x128xf32>
    %65 = arith.addf %63, %64 : vector<8x128xf32>
    %c0_45 = arith.constant 0 : index
    %c0_46 = arith.constant 0 : index
    %66 = vector.load %arg16[%c0_45, %c0_46] : memref<8x128xf32, #tpu.memory_space<vmem>>, vector<8x128xf32>
    tpu.vector_store %arg16[%c0_45, %c0_46], %65 {strides = array<i32>} : memref<8x128xf32, #tpu.memory_space<vmem>>, vector<8x128xf32>,
    return
  }
  func.func @transform_0(%arg0: i32) -> (i32, i32) {
    %c0_i32 = arith.constant 0 : i32
    %c0_i32_0 = arith.constant 0 : i32
    return %arg0, %c0_i32 : i32, i32
  }
  func.func @transform_1(%arg0: i32) -> (i32, i32) {
    %c0_i32 = arith.constant 0 : i32
    %c0_i32_0 = arith.constant 0 : i32
    %c0_i32_1 = arith.constant 0 : i32
    return %c0_i32, %c0_i32_0 : i32, i32
  }
  func.func @transform_2(%arg0: i32) -> (i32, i32) {
    %c0_i32 = arith.constant 0 : i32
    %c0_i32_0 = arith.constant 0 : i32
    %c0_i32_1 = arith.constant 0 : i32
    return %c0_i32, %c0_i32_0 : i32, i32
  }
  func.func @transform_3(%arg0: i32) -> (i32, i32) {
    %c0_i32 = arith.constant 0 : i32
    %c0_i32_0 = arith.constant 0 : i32
    %c0_i32_1 = arith.constant 0 : i32
    return %c0_i32, %c0_i32_0 : i32, i32
  }
  func.func @transform_4(%arg0: i32) -> (i32, i32) {
    %c0_i32 = arith.constant 0 : i32
    %c0_i32_0 = arith.constant 0 : i32
    %c0_i32_1 = arith.constant 0 : i32
    return %c0_i32, %c0_i32_0 : i32, i32
  }
  func.func @transform_5(%arg0: i32) -> (i32, i32) {
    %c0_i32 = arith.constant 0 : i32
    %c0_i32_0 = arith.constant 0 : i32
    %c0_i32_1 = arith.constant 0 : i32
    return %c0_i32, %c0_i32_0 : i32, i32
  }
  func.func @transform_6(%arg0: i32) -> (i32, i32) {
    %c0_i32 = arith.constant 0 : i32
    %c0_i32_0 = arith.constant 0 : i32
    %c0_i32_1 = arith.constant 0 : i32
    return %c0_i32, %c0_i32_0 : i32, i32
  }
  func.func @transform_7(%arg0: i32) -> (i32, i32) {
    %c0_i32 = arith.constant 0 : i32
    %c0_i32_0 = arith.constant 0 : i32
    %c0_i32_1 = arith.constant 0 : i32
    return %c0_i32, %c0_i32_0 : i32, i32
  }
  func.func @transform_8(%arg0: i32) -> (i32, i32) {
    %c0_i32 = arith.constant 0 : i32
    %c0_i32_0 = arith.constant 0 : i32
    %c0_i32_1 = arith.constant 0 : i32
    return %c0_i32, %c0_i32_0 : i32, i32
  }
  func.func @transform_9(%arg0: i32) -> (i32, i32) {
    %c0_i32 = arith.constant 0 : i32
    %c0_i32_0 = arith.constant 0 : i32
    %c0_i32_1 = arith.constant 0 : i32
    return %c0_i32, %c0_i32_0 : i32, i32
  }
  func.func @transform_10(%arg0: i32) -> (i32, i32) {
    %c0_i32 = arith.constant 0 : i32
    %c0_i32_0 = arith.constant 0 : i32
    %c0_i32_1 = arith.constant 0 : i32
    return %c0_i32, %c0_i32_0 : i32, i32
  }
  func.func @transform_11(%arg0: i32) -> (i32, i32) {
    %c0_i32 = arith.constant 0 : i32
    %c0_i32_0 = arith.constant 0 : i32
    %c0_i32_1 = arith.constant 0 : i32
    return %c0_i32, %c0_i32_0 : i32, i32
  }
  func.func @transform_12(%arg0: i32) -> (i32, i32) {
    %c0_i32 = arith.constant 0 : i32
    %c0_i32_0 = arith.constant 0 : i32
    %c0_i32_1 = arith.constant 0 : i32
    return %c0_i32, %c0_i32_0 : i32, i32
  }
  func.func @transform_13(%arg0: i32) -> (i32, i32) {
    %c0_i32 = arith.constant 0 : i32
    %c0_i32_0 = arith.constant 0 : i32
    %c0_i32_1 = arith.constant 0 : i32
    return %c0_i32, %c0_i32_0 : i32, i32
  }
  func.func @transform_14(%arg0: i32) -> (i32, i32) {
    %c0_i32 = arith.constant 0 : i32
    %c0_i32_0 = arith.constant 0 : i32
    %c0_i32_1 = arith.constant 0 : i32
    return %c0_i32, %c0_i32_0 : i32, i32
  }
  func.func @transform_15(%arg0: i32) -> (i32, i32) {
    %c0_i32 = arith.constant 0 : i32
    %c0_i32_0 = arith.constant 0 : i32
    return %arg0, %c0_i32 : i32, i32
  }
  func.func @transform_16(%arg0: i32) -> (i32, i32) {
    %c0_i32 = arith.constant 0 : i32
    %c0_i32_0 = arith.constant 0 : i32
    return %arg0, %c0_i32 : i32, i32
  }
}

module attributes {stable_mosaic.version = 11 : i64} {
  func.func @_ae_fused_kernel(%arg0: i32, %arg1: memref<8x16xf32, #tpu.memory_space<vmem>>, %arg2: memref<16x128xbf16, #tpu.memory_space<vmem>>, %arg3: memref<1x128xf32, #tpu.memory_space<vmem>>, %arg4: memref<128x128xbf16, #tpu.memory_space<vmem>>, %arg5: memref<1x128xf32, #tpu.memory_space<vmem>>, %arg6: memref<128x128xbf16, #tpu.memory_space<vmem>>, %arg7: memref<1x128xf32, #tpu.memory_space<vmem>>, %arg8: memref<128x256xbf16, #tpu.memory_space<vmem>>, %arg9: memref<1x256xf32, #tpu.memory_space<vmem>>, %arg10: memref<128x128xbf16, #tpu.memory_space<vmem>>, %arg11: memref<1x128xf32, #tpu.memory_space<vmem>>, %arg12: memref<128x128xbf16, #tpu.memory_space<vmem>>, %arg13: memref<1x128xf32, #tpu.memory_space<vmem>>, %arg14: memref<128x128xbf16, #tpu.memory_space<vmem>>, %arg15: memref<1x128xf32, #tpu.memory_space<vmem>>, %arg16: memref<8x128xf32, #tpu.memory_space<vmem>>, %arg17: memref<8x128xf32, #tpu.memory_space<vmem>>) attributes {dimension_semantics = [#tpu.dimension_semantics<parallel>], iteration_bounds = array<i64: 1>, scalar_prefetch = 0 : i64, scratch_operands = 0 : i64, tpu.core_type = #tpu.core_type<tc>, window_params = [{transform_indices = @transform_0, window_bounds = array<i64: 8, 16>}, {pipeline_mode = #tpu.pipeline_mode<synchronous>, transform_indices = @transform_1, window_bounds = array<i64: 16, 128>}, {pipeline_mode = #tpu.pipeline_mode<synchronous>, transform_indices = @transform_2, window_bounds = array<i64: 1, 128>}, {pipeline_mode = #tpu.pipeline_mode<synchronous>, transform_indices = @transform_3, window_bounds = array<i64: 128, 128>}, {pipeline_mode = #tpu.pipeline_mode<synchronous>, transform_indices = @transform_4, window_bounds = array<i64: 1, 128>}, {pipeline_mode = #tpu.pipeline_mode<synchronous>, transform_indices = @transform_5, window_bounds = array<i64: 128, 128>}, {pipeline_mode = #tpu.pipeline_mode<synchronous>, transform_indices = @transform_6, window_bounds = array<i64: 1, 128>}, {pipeline_mode = #tpu.pipeline_mode<synchronous>, transform_indices = @transform_7, window_bounds = array<i64: 128, 256>}, {pipeline_mode = #tpu.pipeline_mode<synchronous>, transform_indices = @transform_8, window_bounds = array<i64: 1, 256>}, {pipeline_mode = #tpu.pipeline_mode<synchronous>, transform_indices = @transform_9, window_bounds = array<i64: 128, 128>}, {pipeline_mode = #tpu.pipeline_mode<synchronous>, transform_indices = @transform_10, window_bounds = array<i64: 1, 128>}, {pipeline_mode = #tpu.pipeline_mode<synchronous>, transform_indices = @transform_11, window_bounds = array<i64: 128, 128>}, {pipeline_mode = #tpu.pipeline_mode<synchronous>, transform_indices = @transform_12, window_bounds = array<i64: 1, 128>}, {pipeline_mode = #tpu.pipeline_mode<synchronous>, transform_indices = @transform_13, window_bounds = array<i64: 128, 128>}, {pipeline_mode = #tpu.pipeline_mode<synchronous>, transform_indices = @transform_14, window_bounds = array<i64: 1, 128>}, {transform_indices = @transform_15, window_bounds = array<i64: 8, 128>}, {transform_indices = @transform_16, window_bounds = array<i64: 8, 128>}]} {
    %c0 = arith.constant 0 : index
    %c0_0 = arith.constant 0 : index
    %0 = vector.load %arg1[%c0, %c0_0] : memref<8x16xf32, #tpu.memory_space<vmem>>, vector<8x16xf32>
    %c0_1 = arith.constant 0 : index
    %c0_2 = arith.constant 0 : index
    %1 = vector.load %arg2[%c0_1, %c0_2] : memref<16x128xbf16, #tpu.memory_space<vmem>>, vector<16x128xbf16>
    %c0_3 = arith.constant 0 : index
    %c0_4 = arith.constant 0 : index
    %2 = vector.load %arg3[%c0_3, %c0_4] : memref<1x128xf32, #tpu.memory_space<vmem>>, vector<1x128xf32>
    %3 = arith.truncf %0 : vector<8x16xf32> to vector<8x16xbf16>
    %cst = arith.constant dense<0.000000e+00> : vector<8x128xf32>
    %4 = tpu.matmul %3, %1, %cst {dimension_numbers = #tpu.dot_dimension_numbers<[1], [0], [0], [1], [0, 0, 1, 1], [], []>} : vector<8x16xbf16>, vector<16x128xbf16>, vector<8x128xf32> -> vector<8x128xf32>
    %5 = vector.broadcast %2 : vector<1x128xf32> to vector<8x128xf32>
    %6 = arith.addf %4, %5 : vector<8x128xf32>
    %cst_5 = arith.constant 0.000000e+00 : f32
    %7 = vector.broadcast %cst_5 : f32 to vector<8x128xf32>
    %8 = arith.cmpf oge, %6, %7 : vector<8x128xf32>
    %cst_6 = arith.constant 0.00999999977 : f32
    %9 = vector.broadcast %cst_6 : f32 to vector<8x128xf32>
    %10 = arith.mulf %9, %6 : vector<8x128xf32>
    %11 = arith.select %8, %6, %10 : vector<8x128xi1>, vector<8x128xf32>
    %c0_7 = arith.constant 0 : index
    %c0_8 = arith.constant 0 : index
    %12 = vector.load %arg4[%c0_7, %c0_8] : memref<128x128xbf16, #tpu.memory_space<vmem>>, vector<128x128xbf16>
    %c0_9 = arith.constant 0 : index
    %c0_10 = arith.constant 0 : index
    %13 = vector.load %arg5[%c0_9, %c0_10] : memref<1x128xf32, #tpu.memory_space<vmem>>, vector<1x128xf32>
    %14 = arith.truncf %11 : vector<8x128xf32> to vector<8x128xbf16>
    %cst_11 = arith.constant dense<0.000000e+00> : vector<8x128xf32>
    %15 = tpu.matmul %14, %12, %cst_11 {dimension_numbers = #tpu.dot_dimension_numbers<[1], [0], [0], [1], [0, 0, 1, 1], [], []>} : vector<8x128xbf16>, vector<128x128xbf16>, vector<8x128xf32> -> vector<8x128xf32>
    %16 = vector.broadcast %13 : vector<1x128xf32> to vector<8x128xf32>
    %17 = arith.addf %15, %16 : vector<8x128xf32>
    %cst_12 = arith.constant 0.000000e+00 : f32
    %18 = vector.broadcast %cst_12 : f32 to vector<8x128xf32>
    %19 = arith.cmpf oge, %17, %18 : vector<8x128xf32>
    %cst_13 = arith.constant 0.00999999977 : f32
    %20 = vector.broadcast %cst_13 : f32 to vector<8x128xf32>
    %21 = arith.mulf %20, %17 : vector<8x128xf32>
    %22 = arith.select %19, %17, %21 : vector<8x128xi1>, vector<8x128xf32>
    %c0_14 = arith.constant 0 : index
    %c0_15 = arith.constant 0 : index
    %23 = vector.load %arg6[%c0_14, %c0_15] : memref<128x128xbf16, #tpu.memory_space<vmem>>, vector<128x128xbf16>
    %c0_16 = arith.constant 0 : index
    %c0_17 = arith.constant 0 : index
    %24 = vector.load %arg7[%c0_16, %c0_17] : memref<1x128xf32, #tpu.memory_space<vmem>>, vector<1x128xf32>
    %25 = arith.truncf %22 : vector<8x128xf32> to vector<8x128xbf16>
    %cst_18 = arith.constant dense<0.000000e+00> : vector<8x128xf32>
    %26 = tpu.matmul %25, %23, %cst_18 {dimension_numbers = #tpu.dot_dimension_numbers<[1], [0], [0], [1], [0, 0, 1, 1], [], []>} : vector<8x128xbf16>, vector<128x128xbf16>, vector<8x128xf32> -> vector<8x128xf32>
    %27 = vector.broadcast %24 : vector<1x128xf32> to vector<8x128xf32>
    %28 = arith.addf %26, %27 : vector<8x128xf32>
    %c0_19 = arith.constant 0 : index
    %c0_20 = arith.constant 0 : index
    %29 = vector.load %arg8[%c0_19, %c0_20] : memref<128x256xbf16, #tpu.memory_space<vmem>>, vector<128x256xbf16>
    %c0_21 = arith.constant 0 : index
    %c0_22 = arith.constant 0 : index
    %30 = vector.load %arg9[%c0_21, %c0_22] : memref<1x256xf32, #tpu.memory_space<vmem>>, vector<1x256xf32>
    %31 = arith.truncf %28 : vector<8x128xf32> to vector<8x128xbf16>
    %cst_23 = arith.constant dense<0.000000e+00> : vector<8x256xf32>
    %32 = tpu.matmul %31, %29, %cst_23 {dimension_numbers = #tpu.dot_dimension_numbers<[1], [0], [0], [1], [0, 0, 1, 1], [], []>} : vector<8x128xbf16>, vector<128x256xbf16>, vector<8x256xf32> -> vector<8x256xf32>
    %33 = vector.broadcast %30 : vector<1x256xf32> to vector<8x256xf32>
    %34 = arith.addf %32, %33 : vector<8x256xf32>
    %cst_24 = arith.constant 0.000000e+00 : f32
    %35 = vector.broadcast %cst_24 : f32 to vector<8x256xf32>
    %36 = arith.cmpf oge, %34, %35 : vector<8x256xf32>
    %cst_25 = arith.constant 0.00999999977 : f32
    %37 = vector.broadcast %cst_25 : f32 to vector<8x256xf32>
    %38 = arith.mulf %37, %34 : vector<8x256xf32>
    %39 = arith.select %36, %34, %38 : vector<8x256xi1>, vector<8x256xf32>
    %40 = vector.extract_strided_slice %39 {offsets = [0, 128], sizes = [8, 128], strides = [1, 1]} : vector<8x256xf32> to vector<8x128xf32>
    %41 = vector.extract_strided_slice %39 {offsets = [0, 0], sizes = [8, 128], strides = [1, 1]} : vector<8x256xf32> to vector<8x128xf32>
    %c0_26 = arith.constant 0 : index
    %c0_27 = arith.constant 0 : index
    %42 = vector.load %arg10[%c0_26, %c0_27] : memref<128x128xbf16, #tpu.memory_space<vmem>>, vector<128x128xbf16>
    %c0_28 = arith.constant 0 : index
    %c0_29 = arith.constant 0 : index
    %43 = vector.load %arg11[%c0_28, %c0_29] : memref<1x128xf32, #tpu.memory_space<vmem>>, vector<1x128xf32>
    %44 = arith.truncf %40 : vector<8x128xf32> to vector<8x128xbf16>
    %cst_30 = arith.constant dense<0.000000e+00> : vector<8x128xf32>
    %45 = tpu.matmul %44, %42, %cst_30 {dimension_numbers = #tpu.dot_dimension_numbers<[1], [0], [0], [1], [0, 0, 1, 1], [], []>} : vector<8x128xbf16>, vector<128x128xbf16>, vector<8x128xf32> -> vector<8x128xf32>
    %46 = vector.broadcast %43 : vector<1x128xf32> to vector<8x128xf32>
    %47 = arith.addf %45, %46 : vector<8x128xf32>
    %c0_31 = arith.constant 0 : index
    %c0_32 = arith.constant 0 : index
    %48 = vector.load %arg17[%c0_31, %c0_32] : memref<8x128xf32, #tpu.memory_space<vmem>>, vector<8x128xf32>
    tpu.vector_store %arg17[%c0_31, %c0_32], %47 {strides = array<i32>} : memref<8x128xf32, #tpu.memory_space<vmem>>, vector<8x128xf32>,
    %c0_33 = arith.constant 0 : index
    %c0_34 = arith.constant 0 : index
    %49 = vector.load %arg12[%c0_33, %c0_34] : memref<128x128xbf16, #tpu.memory_space<vmem>>, vector<128x128xbf16>
    %c0_35 = arith.constant 0 : index
    %c0_36 = arith.constant 0 : index
    %50 = vector.load %arg13[%c0_35, %c0_36] : memref<1x128xf32, #tpu.memory_space<vmem>>, vector<1x128xf32>
    %51 = arith.truncf %41 : vector<8x128xf32> to vector<8x128xbf16>
    %cst_37 = arith.constant dense<0.000000e+00> : vector<8x128xf32>
    %52 = tpu.matmul %51, %49, %cst_37 {dimension_numbers = #tpu.dot_dimension_numbers<[1], [0], [0], [1], [0, 0, 1, 1], [], []>} : vector<8x128xbf16>, vector<128x128xbf16>, vector<8x128xf32> -> vector<8x128xf32>
    %53 = vector.broadcast %50 : vector<1x128xf32> to vector<8x128xf32>
    %54 = arith.addf %52, %53 : vector<8x128xf32>
    %cst_38 = arith.constant 0.000000e+00 : f32
    %55 = vector.broadcast %cst_38 : f32 to vector<8x128xf32>
    %56 = arith.cmpf oge, %54, %55 : vector<8x128xf32>
    %cst_39 = arith.constant 0.00999999977 : f32
    %57 = vector.broadcast %cst_39 : f32 to vector<8x128xf32>
    %58 = arith.mulf %57, %54 : vector<8x128xf32>
    %59 = arith.select %56, %54, %58 : vector<8x128xi1>, vector<8x128xf32>
    %c0_40 = arith.constant 0 : index
    %c0_41 = arith.constant 0 : index
    %60 = vector.load %arg14[%c0_40, %c0_41] : memref<128x128xbf16, #tpu.memory_space<vmem>>, vector<128x128xbf16>
    %c0_42 = arith.constant 0 : index
    %c0_43 = arith.constant 0 : index
    %61 = vector.load %arg15[%c0_42, %c0_43] : memref<1x128xf32, #tpu.memory_space<vmem>>, vector<1x128xf32>
    %62 = arith.truncf %59 : vector<8x128xf32> to vector<8x128xbf16>
    %cst_44 = arith.constant dense<0.000000e+00> : vector<8x128xf32>
    %63 = tpu.matmul %62, %60, %cst_44 {dimension_numbers = #tpu.dot_dimension_numbers<[1], [0], [0], [1], [0, 0, 1, 1], [], []>} : vector<8x128xbf16>, vector<128x128xbf16>, vector<8x128xf32> -> vector<8x128xf32>
    %64 = vector.broadcast %61 : vector<1x128xf32> to vector<8x128xf32>
    %65 = arith.addf %63, %64 : vector<8x128xf32>
    %c0_45 = arith.constant 0 : index
    %c0_46 = arith.constant 0 : index
    %66 = vector.load %arg16[%c0_45, %c0_46] : memref<8x128xf32, #tpu.memory_space<vmem>>, vector<8x128xf32>
    tpu.vector_store %arg16[%c0_45, %c0_46], %65 {strides = array<i32>} : memref<8x128xf32, #tpu.memory_space<vmem>>, vector<8x128xf32>,
    return
  }
  func.func @transform_0(%arg0: i32) -> (i32, i32) {
    %c0_i32 = arith.constant 0 : i32
    %c0_i32_0 = arith.constant 0 : i32
    return %arg0, %c0_i32 : i32, i32
  }
  func.func @transform_1(%arg0: i32) -> (i32, i32) {
    %c0_i32 = arith.constant 0 : i32
    %c0_i32_0 = arith.constant 0 : i32
    %c0_i32_1 = arith.constant 0 : i32
    return %c0_i32, %c0_i32_0 : i32, i32
  }
  func.func @transform_2(%arg0: i32) -> (i32, i32) {
    %c0_i32 = arith.constant 0 : i32
    %c0_i32_0 = arith.constant 0 : i32
    %c0_i32_1 = arith.constant 0 : i32
    return %c0_i32, %c0_i32_0 : i32, i32
  }
  func.func @transform_3(%arg0: i32) -> (i32, i32) {
    %c0_i32 = arith.constant 0 : i32
    %c0_i32_0 = arith.constant 0 : i32
    %c0_i32_1 = arith.constant 0 : i32
    return %c0_i32, %c0_i32_0 : i32, i32
  }
  func.func @transform_4(%arg0: i32) -> (i32, i32) {
    %c0_i32 = arith.constant 0 : i32
    %c0_i32_0 = arith.constant 0 : i32
    %c0_i32_1 = arith.constant 0 : i32
    return %c0_i32, %c0_i32_0 : i32, i32
  }
  func.func @transform_5(%arg0: i32) -> (i32, i32) {
    %c0_i32 = arith.constant 0 : i32
    %c0_i32_0 = arith.constant 0 : i32
    %c0_i32_1 = arith.constant 0 : i32
    return %c0_i32, %c0_i32_0 : i32, i32
  }
  func.func @transform_6(%arg0: i32) -> (i32, i32) {
    %c0_i32 = arith.constant 0 : i32
    %c0_i32_0 = arith.constant 0 : i32
    %c0_i32_1 = arith.constant 0 : i32
    return %c0_i32, %c0_i32_0 : i32, i32
  }
  func.func @transform_7(%arg0: i32) -> (i32, i32) {
    %c0_i32 = arith.constant 0 : i32
    %c0_i32_0 = arith.constant 0 : i32
    %c0_i32_1 = arith.constant 0 : i32
    return %c0_i32, %c0_i32_0 : i32, i32
  }
  func.func @transform_8(%arg0: i32) -> (i32, i32) {
    %c0_i32 = arith.constant 0 : i32
    %c0_i32_0 = arith.constant 0 : i32
    %c0_i32_1 = arith.constant 0 : i32
    return %c0_i32, %c0_i32_0 : i32, i32
  }
  func.func @transform_9(%arg0: i32) -> (i32, i32) {
    %c0_i32 = arith.constant 0 : i32
    %c0_i32_0 = arith.constant 0 : i32
    %c0_i32_1 = arith.constant 0 : i32
    return %c0_i32, %c0_i32_0 : i32, i32
  }
  func.func @transform_10(%arg0: i32) -> (i32, i32) {
    %c0_i32 = arith.constant 0 : i32
    %c0_i32_0 = arith.constant 0 : i32
    %c0_i32_1 = arith.constant 0 : i32
    return %c0_i32, %c0_i32_0 : i32, i32
  }
  func.func @transform_11(%arg0: i32) -> (i32, i32) {
    %c0_i32 = arith.constant 0 : i32
    %c0_i32_0 = arith.constant 0 : i32
    %c0_i32_1 = arith.constant 0 : i32
    return %c0_i32, %c0_i32_0 : i32, i32
  }
  func.func @transform_12(%arg0: i32) -> (i32, i32) {
    %c0_i32 = arith.constant 0 : i32
    %c0_i32_0 = arith.constant 0 : i32
    %c0_i32_1 = arith.constant 0 : i32
    return %c0_i32, %c0_i32_0 : i32, i32
  }
  func.func @transform_13(%arg0: i32) -> (i32, i32) {
    %c0_i32 = arith.constant 0 : i32
    %c0_i32_0 = arith.constant 0 : i32
    %c0_i32_1 = arith.constant 0 : i32
    return %c0_i32, %c0_i32_0 : i32, i32
  }
  func.func @transform_14(%arg0: i32) -> (i32, i32) {
    %c0_i32 = arith.constant 0 : i32
    %c0_i32_0 = arith.constant 0 : i32
    %c0_i32_1 = arith.constant 0 : i32
    return %c0_i32, %c0_i32_0 : i32, i32
  }
  func.func @transform_15(%arg0: i32) -> (i32, i32) {
    %c0_i32 = arith.constant 0 : i32
    %c0_i32_0 = arith.constant 0 : i32
    return %arg0, %c0_i32 : i32, i32
  }
  func.func @transform_16(%arg0: i32) -> (i32, i32) {
    %c0_i32 = arith.constant 0 : i32
    %c0_i32_0 = arith.constant 0 : i32
    return %arg0, %c0_i32 : i32, i32
  }
}

</mosaic_0001>

<llo_original>
// kernel: tpu_custom_call.1
$region0: #{tpu_custom_call.1}
  #allocation0 [shape = 'u32[]', space=smem, size = 0x4, offset = 0x4, fixed_abs, tag = 'smem constant byte address 0x4 - core index']
  #allocation1 [shape = 'u32[72,128]{1,0:T(1,128)}', space=vmem, size = 0x9000, scoped, tag = 'internal scratch']
  %s0 = inlined_call_operand.hbm [shape: f32[8,16], index: 0, kind: input, shape index: {}]
  %s1 = inlined_call_operand.hbm [shape: bf16[16,128], index: 1, kind: input, shape index: {}]
  %s2 = inlined_call_operand.vmem [shape: f32[1,128], index: 2, kind: input, shape index: {}]
  %s3 = inlined_call_operand.hbm [shape: bf16[128,128], index: 3, kind: input, shape index: {}]
  %s4 = inlined_call_operand.hbm [shape: f32[1,128], index: 4, kind: input, shape index: {}]
  %s5 = inlined_call_operand.hbm [shape: bf16[128,128], index: 5, kind: input, shape index: {}]
  %s6 = inlined_call_operand.vmem [shape: f32[1,128], index: 6, kind: input, shape index: {}]
  %s7 = inlined_call_operand.hbm [shape: bf16[128,256], index: 7, kind: input, shape index: {}]
  %s8 = inlined_call_operand.vmem [shape: f32[1,256], index: 8, kind: input, shape index: {}]
  %s9 = inlined_call_operand.hbm [shape: bf16[128,128], index: 9, kind: input, shape index: {}]
  %s10 = inlined_call_operand.vmem [shape: f32[1,128], index: 10, kind: input, shape index: {}]
  %s11 = inlined_call_operand.hbm [shape: bf16[128,128], index: 11, kind: input, shape index: {}]
  %s12 = inlined_call_operand.vmem [shape: f32[1,128], index: 12, kind: input, shape index: {}]
  %s13 = inlined_call_operand.hbm [shape: bf16[128,128], index: 13, kind: input, shape index: {}]
  %s14 = inlined_call_operand.vmem [shape: f32[1,128], index: 14, kind: input, shape index: {}]
  %s15 = inlined_call_operand.hbm [shape: f32[8,128], index: 15, kind: output, shape index: {0}]
  %s16 = inlined_call_operand.hbm [shape: f32[8,128], index: 16, kind: output, shape index: {1}]
  %17 = xla_tuple %s15, %s16
  %s18 = sld [smem:[#allocation0]]
  $region114: #{tpu_custom_call.1} parent=0
    _
  %s20 = ssub.s32 1, %s18
  %s21 = scalar_select 0, %s20, %s18
  $region1: #{tpu_custom_call.1} parent=0
    #allocation2 [shape = 'u8[4096]{0}', space=vmem, size = 0x1000, scoped, tag = 'input window, operand 0, single buffered']
    #allocation3 [shape = 's32[1]{0}', space=sflag, size = 0x4, scoped, tag = 'scoped memory for tpu_custom_call.1']
    #allocation4 [shape = 's32[1]{0}', space=sflag, size = 0x4, scoped, tag = 'scoped memory for tpu_custom_call.1']
    #allocation5 [shape = 'u8[4096]{0}', space=vmem, size = 0x1000, scoped, tag = 'input window, operand 1, single buffered']
    #allocation6 [shape = 's32[1]{0}', space=sflag, size = 0x4, scoped, tag = 'scoped memory for tpu_custom_call.1']
    #allocation7 [shape = 'u8[32768]{0}', space=vmem, size = 0x8000, scoped, tag = 'input window, operand 3, single buffered']
    #allocation8 [shape = 'u8[512]{0}', space=vmem, size = 0x400, scoped, tag = 'input window, operand 4, single buffered']
    #allocation9 [shape = 's32[1]{0}', space=sflag, size = 0x4, scoped, tag = 'scoped memory for tpu_custom_call.1']
    #allocation10 [shape = 'u8[32768]{0}', space=vmem, size = 0x8000, scoped, tag = 'input window, operand 5, single buffered']
    #allocation11 [shape = 'u8[65536]{0}', space=vmem, size = 0x10000, scoped, tag = 'input window, operand 7, single buffered']
    #allocation12 [shape = 's32[1]{0}', space=sflag, size = 0x4, scoped, tag = 'scoped memory for tpu_custom_call.1']
    #allocation13 [shape = 'u8[32768]{0}', space=vmem, size = 0x8000, scoped, tag = 'input window, operand 9, single buffered']
    #allocation14 [shape = 'u8[32768]{0}', space=vmem, size = 0x8000, scoped, tag = 'input window, operand 11, single buffered']
    #allocation15 [shape = 's32[1]{0}', space=sflag, size = 0x4, scoped, tag = 'scoped memory for tpu_custom_call.1']
    #allocation16 [shape = 'u8[32768]{0}', space=vmem, size = 0x8000, scoped, tag = 'input window, operand 13, single buffered']
    #allocation17 [shape = 'u8[4096]{0}', space=vmem, size = 0x1000, scoped, tag = 'output window, operand 0, single buffered']
    #allocation18 [shape = 'u8[4096]{0}', space=vmem, size = 0x1000, scoped, tag = 'output window, operand 1, single buffered']
    #allocation19 [shape = 's32[1]{0}', space=sflag, size = 0x4, scoped, tag = 'scoped memory for tpu_custom_call.1']
    %22 = vsyncpa [#allocation3], 0
    %23 = vsyncpa [#allocation6], 0
    %24 = vsyncpa [#allocation9], 0
    %25 = vsyncpa [#allocation12], 0
    %26 = vsyncpa [#allocation15], 0
    %27 = vsyncpa [#allocation4], 0
    %28 = vsyncpa [#allocation19], 0
    // Predicated region
    $region2: #{tpu_custom_call.1} parent=1 // pred_check
      _
    $region3: #{tpu_custom_call.1} parent=1 // pred_check_branch
      %30 = sbr.rel (0) target = $region5
    $region4: #{tpu_custom_call.1} parent=1 // pred_region
      %32 = vsyncadd [#allocation3], 0
      %s34 = sshll.u32 %s0, 4
      %s35 = int_to_ptr.hbm [resolvable:$true] %s34
      %s36 = sshll.u32 [#allocation2], 4
      %s37 = int_to_ptr.vmem [resolvable:$true] %s36
      %39 = dma.hbm_to_vmem [thread:$0]  %s35, 128, %s37, [#allocation3]
    $region5: #{tpu_custom_call.1} parent=1 // pred_fallthru
      _
    // Predicated region
    $region6: #{tpu_custom_call.1} parent=1 // pred_check
      _
    $region7: #{tpu_custom_call.1} parent=1 // pred_check_branch
      %41 = sbr.rel (0) target = $region9
    $region8: #{tpu_custom_call.1} parent=1 // pred_region
      %43 = vsyncadd [#allocation6], 0
      %s44 = sshll.u32 %s1, 4
      %s45 = int_to_ptr.hbm [resolvable:$true] %s44
      %s46 = sshll.u32 [#allocation5], 4
      %s47 = int_to_ptr.vmem [resolvable:$true] %s46
      %52 = dma.hbm_to_vmem [thread:$0]  %s45, 128, %s47, [#allocation6], 64, 64, 4
    $region9: #{tpu_custom_call.1} parent=1 // pred_fallthru
      _
    // Predicated region
    $region10: #{tpu_custom_call.1} parent=1 // pred_check
      _
    $region11: #{tpu_custom_call.1} parent=1 // pred_check_branch
      %54 = sbr.rel (0) target = $region13
    $region12: #{tpu_custom_call.1} parent=1 // pred_region
      _
    $region13: #{tpu_custom_call.1} parent=1 // pred_fallthru
      _
    // Predicated region
    $region14: #{tpu_custom_call.1} parent=1 // pred_check
      _
    $region15: #{tpu_custom_call.1} parent=1 // pred_check_branch
      %56 = sbr.rel (0) target = $region17
    $region16: #{tpu_custom_call.1} parent=1 // pred_region
      %58 = vsyncadd [#allocation6], 0
      %s59 = sshll.u32 %s3, 4
      %s60 = int_to_ptr.hbm [resolvable:$true] %s59
      %s61 = sshll.u32 [#allocation7], 4
      %s62 = int_to_ptr.vmem [resolvable:$true] %s61
      %67 = dma.hbm_to_vmem [thread:$0]  %s60, 1024, %s62, [#allocation6], 64, 64, 4
    $region17: #{tpu_custom_call.1} parent=1 // pred_fallthru
      _
    // Predicated region
    $region18: #{tpu_custom_call.1} parent=1 // pred_check
      _
    $region19: #{tpu_custom_call.1} parent=1 // pred_check_branch
      %69 = sbr.rel (0) target = $region21
    $region20: #{tpu_custom_call.1} parent=1 // pred_region
      %71 = vsyncadd [#allocation9], 0
      %s73 = sshll.u32 %s4, 4
      %s74 = int_to_ptr.hbm [resolvable:$true] %s73
      %s75 = sshll.u32 [#allocation8], 4
      %s76 = int_to_ptr.vmem [resolvable:$true] %s75
      %78 = dma.hbm_to_vmem [thread:$0]  %s74, 16, %s76, [#allocation9]
    $region21: #{tpu_custom_call.1} parent=1 // pred_fallthru
      _
    // Predicated region
    $region22: #{tpu_custom_call.1} parent=1 // pred_check
      _
    $region23: #{tpu_custom_call.1} parent=1 // pred_check_branch
      %80 = sbr.rel (0) target = $region25
    $region24: #{tpu_custom_call.1} parent=1 // pred_region
      %82 = vsyncadd [#allocation9], 0
      %s83 = sshll.u32 %s5, 4
      %s84 = int_to_ptr.hbm [resolvable:$true] %s83
      %s85 = sshll.u32 [#allocation10], 4
      %s86 = int_to_ptr.vmem [resolvable:$true] %s85
      %91 = dma.hbm_to_vmem [thread:$0]  %s84, 1024, %s86, [#allocation9], 64, 64, 4
    $region25: #{tpu_custom_call.1} parent=1 // pred_fallthru
      _
    // Predicated region
    $region26: #{tpu_custom_call.1} parent=1 // pred_check
      _
    $region27: #{tpu_custom_call.1} parent=1 // pred_check_branch
      %93 = sbr.rel (0) target = $region29
    $region28: #{tpu_custom_call.1} parent=1 // pred_region
      _
    $region29: #{tpu_custom_call.1} parent=1 // pred_fallthru
      _
    // Predicated region
    $region30: #{tpu_custom_call.1} parent=1 // pred_check
      _
    $region31: #{tpu_custom_call.1} parent=1 // pred_check_branch
      %95 = sbr.rel (0) target = $region33
    $region32: #{tpu_custom_call.1} parent=1 // pred_region
      %97 = vsyncadd [#allocation12], 0
      %s98 = sshll.u32 %s7, 4
      %s99 = int_to_ptr.hbm [resolvable:$true] %s98
      %s100 = sshll.u32 [#allocation11], 4
      %s101 = int_to_ptr.vmem [resolvable:$true] %s100
      %106 = dma.hbm_to_vmem [thread:$0]  %s99, 2048, %s101, [#allocation12], 128, 128, 8
    $region33: #{tpu_custom_call.1} parent=1 // pred_fallthru
      _
    // Predicated region
    $region34: #{tpu_custom_call.1} parent=1 // pred_check
      _
    $region35: #{tpu_custom_call.1} parent=1 // pred_check_branch
      %108 = sbr.rel (0) target = $region37
    $region36: #{tpu_custom_call.1} parent=1 // pred_region
      _
    $region37: #{tpu_custom_call.1} parent=1 // pred_fallthru
      _
    // Predicated region
    $region38: #{tpu_custom_call.1} parent=1 // pred_check
      _
    $region39: #{tpu_custom_call.1} parent=1 // pred_check_branch
      %110 = sbr.rel (0) target = $region41
    $region40: #{tpu_custom_call.1} parent=1 // pred_region
      %112 = vsyncadd [#allocation12], 0
      %s113 = sshll.u32 %s9, 4
      %s114 = int_to_ptr.hbm [resolvable:$true] %s113
      %s115 = sshll.u32 [#allocation13], 4
      %s116 = int_to_ptr.vmem [resolvable:$true] %s115
      %121 = dma.hbm_to_vmem [thread:$0]  %s114, 1024, %s116, [#allocation12], 64, 64, 4
    $region41: #{tpu_custom_call.1} parent=1 // pred_fallthru
      _
    // Predicated region
    $region42: #{tpu_custom_call.1} parent=1 // pred_check
      _
    $region43: #{tpu_custom_call.1} parent=1 // pred_check_branch
      %123 = sbr.rel (0) target = $region45
    $region44: #{tpu_custom_call.1} parent=1 // pred_region
      _
    $region45: #{tpu_custom_call.1} parent=1 // pred_fallthru
      _
    // Predicated region
    $region46: #{tpu_custom_call.1} parent=1 // pred_check
      _
    $region47: #{tpu_custom_call.1} parent=1 // pred_check_branch
      %125 = sbr.rel (0) target = $region49
    $region48: #{tpu_custom_call.1} parent=1 // pred_region
      %127 = vsyncadd [#allocation15], 0
      %s128 = sshll.u32 %s11, 4
      %s129 = int_to_ptr.hbm [resolvable:$true] %s128
      %s130 = sshll.u32 [#allocation14], 4
      %s131 = int_to_ptr.vmem [resolvable:$true] %s130
      %136 = dma.hbm_to_vmem [thread:$0]  %s129, 1024, %s131, [#allocation15], 64, 64, 4
    $region49: #{tpu_custom_call.1} parent=1 // pred_fallthru
      _
    // Predicated region
    $region50: #{tpu_custom_call.1} parent=1 // pred_check
      _
    $region51: #{tpu_custom_call.1} parent=1 // pred_check_branch
      %138 = sbr.rel (0) target = $region53
    $region52: #{tpu_custom_call.1} parent=1 // pred_region
      _
    $region53: #{tpu_custom_call.1} parent=1 // pred_fallthru
      _
    // Predicated region
    $region54: #{tpu_custom_call.1} parent=1 // pred_check
      _
    $region55: #{tpu_custom_call.1} parent=1 // pred_check_branch
      %140 = sbr.rel (0) target = $region57
    $region56: #{tpu_custom_call.1} parent=1 // pred_region
      %142 = vsyncadd [#allocation15], 0
      %s143 = sshll.u32 %s13, 4
      %s144 = int_to_ptr.hbm [resolvable:$true] %s143
      %s145 = sshll.u32 [#allocation16], 4
      %s146 = int_to_ptr.vmem [resolvable:$true] %s145
      %151 = dma.hbm_to_vmem [thread:$0]  %s144, 1024, %s146, [#allocation15], 64, 64, 4
    $region57: #{tpu_custom_call.1} parent=1 // pred_fallthru
      _
    // Predicated region
    $region58: #{tpu_custom_call.1} parent=1 // pred_check
      _
    $region59: #{tpu_custom_call.1} parent=1 // pred_check_branch
      %153 = sbr.rel (0) target = $region61
    $region60: #{tpu_custom_call.1} parent=1 // pred_region
      _
    $region61: #{tpu_custom_call.1} parent=1 // pred_fallthru
      _
    // Predicated region
    $region62: #{tpu_custom_call.1} parent=1 // pred_check
      _
    $region63: #{tpu_custom_call.1} parent=1 // pred_check_branch
      %155 = sbr.rel (0) target = $region65
    $region64: #{tpu_custom_call.1} parent=1 // pred_region
      %157 = dma.done [#allocation3], 128
    $region65: #{tpu_custom_call.1} parent=1 // pred_fallthru
      _
    // Predicated region
    $region66: #{tpu_custom_call.1} parent=1 // pred_check
      _
    $region67: #{tpu_custom_call.1} parent=1 // pred_check_branch
      %159 = sbr.rel (0) target = $region69
    $region68: #{tpu_custom_call.1} parent=1 // pred_region
      %161 = dma.done [#allocation6], 128
    $region69: #{tpu_custom_call.1} parent=1 // pred_fallthru
      _
    // Predicated region
    $region70: #{tpu_custom_call.1} parent=1 // pred_check
      _
    $region71: #{tpu_custom_call.1} parent=1 // pred_check_branch
      %163 = sbr.rel (0) target = $region73
    $region72: #{tpu_custom_call.1} parent=1 // pred_region
      %165 = dma.done [#allocation6], 1024
    $region73: #{tpu_custom_call.1} parent=1 // pred_fallthru
      _
    // Predicated region
    $region74: #{tpu_custom_call.1} parent=1 // pred_check
      _
    $region75: #{tpu_custom_call.1} parent=1 // pred_check_branch
      %167 = sbr.rel (0) target = $region77
    $region76: #{tpu_custom_call.1} parent=1 // pred_region
      %169 = dma.done [#allocation9], 16
    $region77: #{tpu_custom_call.1} parent=1 // pred_fallthru
      _
    // Predicated region
    $region78: #{tpu_custom_call.1} parent=1 // pred_check
      _
    $region79: #{tpu_custom_call.1} parent=1 // pred_check_branch
      %171 = sbr.rel (0) target = $region81
    $region80: #{tpu_custom_call.1} parent=1 // pred_region
      %173 = dma.done [#allocation9], 1024
    $region81: #{tpu_custom_call.1} parent=1 // pred_fallthru
      _
    // Predicated region
    $region82: #{tpu_custom_call.1} parent=1 // pred_check
      _
    $region83: #{tpu_custom_call.1} parent=1 // pred_check_branch
      %175 = sbr.rel (0) target = $region85
    $region84: #{tpu_custom_call.1} parent=1 // pred_region
      %177 = dma.done [#allocation12], 2048
    $region85: #{tpu_custom_call.1} parent=1 // pred_fallthru
      _
    // Predicated region
    $region86: #{tpu_custom_call.1} parent=1 // pred_check
      _
    $region87: #{tpu_custom_call.1} parent=1 // pred_check_branch
      %179 = sbr.rel (0) target = $region89
    $region88: #{tpu_custom_call.1} parent=1 // pred_region
      %181 = dma.done [#allocation12], 1024
    $region89: #{tpu_custom_call.1} parent=1 // pred_fallthru
      _
    // Predicated region
    $region90: #{tpu_custom_call.1} parent=1 // pred_check
      _
    $region91: #{tpu_custom_call.1} parent=1 // pred_check_branch
      %183 = sbr.rel (0) target = $region93
    $region92: #{tpu_custom_call.1} parent=1 // pred_region
      %185 = dma.done [#allocation15], 1024
    $region93: #{tpu_custom_call.1} parent=1 // pred_fallthru
      _
    // Predicated region
    $region94: #{tpu_custom_call.1} parent=1 // pred_check
      _
    $region95: #{tpu_custom_call.1} parent=1 // pred_check_branch
      %187 = sbr.rel (0) target = $region97
    $region96: #{tpu_custom_call.1} parent=1 // pred_region
      %189 = dma.done [#allocation15], 1024
    $region97: #{tpu_custom_call.1} parent=1 // pred_fallthru
      _
    %v191 = vld [vmem:[#allocation2] sm:$0xff]
    %v192 = vld [vmem:[#allocation5] sm:$0xf]
    %v193 = vld [vmem:[#allocation5 + $0x4] sm:$0xf]
    %v194 = vld [vmem:[%s2] sm:$0x1]
    %v195 = vpack.c.bf16 %v191, %v191
    %v197 = vperm.slane %v194, 0
    %v201 = vunpack.c.l.b16 %v192
    %v202 = vunpack.c.l.b16 %v193
    %v203 = vpack.c.b16 %v202, %v201
    %vm205 = vcmask 130048
    %v207 = vsel %vm205, %v195, 0
    %209 = vmatpush.bf16.msra.mxu0 0
    %210 = vmatpush.bf16.msra.mxu0 0
    %211 = vmatpush.bf16.msra.mxu0 0
    %212 = vmatpush.bf16.msra.mxu0 0
    %213 = vmatpush.bf16.msra.mxu0 0
    %214 = vmatpush.bf16.msra.mxu0 0
    %215 = vmatpush.bf16.msra.mxu0 0
    %216 = vmatpush.bf16.msra.mxu0 %v203
    %217 = vmatmul.bf16.gmra.mxu0 %v207
    %v218 = vpop.f32.mrf.mxu0
    %v219 = vadd.f32 %v197, %v218
    %v220 = vpop.f32.mrf.mxu0
    %221 = vdwg.mxu0
    %vm222 = vcmp.ge.f32.partialorder %v219, 0.0
    %v223 = vmul.f32 %v219, 0.01
    %v224 = vsel %vm222, %v219, %v223
    %v225 = vld [vmem:[#allocation7] sm:$0xf]
    %v226 = vld [vmem:[#allocation7 + $0x4] sm:$0xf]
    %v227 = vld [vmem:[#allocation7 + $0x8] sm:$0xf]
    %v228 = vld [vmem:[#allocation7 + $0xc] sm:$0xf]
    %v229 = vld [vmem:[#allocation7 + $0x10] sm:$0xf]
    %v230 = vld [vmem:[#allocation7 + $0x14] sm:$0xf]
    %v231 = vld [vmem:[#allocation7 + $0x18] sm:$0xf]
    %v232 = vld [vmem:[#allocation7 + $0x1c] sm:$0xf]
    %v233 = vld [vmem:[#allocation7 + $0x20] sm:$0xf]
    %v234 = vld [vmem:[#allocation7 + $0x24] sm:$0xf]
    %v235 = vld [vmem:[#allocation7 + $0x28] sm:$0xf]
    %v236 = vld [vmem:[#allocation7 + $0x2c] sm:$0xf]
    %v237 = vld [vmem:[#allocation7 + $0x30] sm:$0xf]
    %v238 = vld [vmem:[#allocation7 + $0x34] sm:$0xf]
    %v239 = vld [vmem:[#allocation7 + $0x38] sm:$0xf]
    %v240 = vld [vmem:[#allocation7 + $0x3c] sm:$0xf]
    %v241 = vld [vmem:[#allocation8] sm:$0x1]
    %v242 = vpack.c.bf16 %v224, %v224
    %v244 = vperm.slane %v241, 0
    %v262 = vunpack.c.l.b16 %v225
    %v263 = vunpack.c.l.b16 %v226
    %v264 = vunpack.c.l.b16 %v227
    %v265 = vunpack.c.l.b16 %v228
    %v266 = vunpack.c.l.b16 %v229
    %v267 = vunpack.c.l.b16 %v230
    %v268 = vunpack.c.l.b16 %v231
    %v269 = vunpack.c.l.b16 %v232
    %v270 = vunpack.c.l.b16 %v233
    %v271 = vunpack.c.l.b16 %v234
    %v272 = vunpack.c.l.b16 %v235
    %v273 = vunpack.c.l.b16 %v236
    %v274 = vunpack.c.l.b16 %v237
    %v275 = vunpack.c.l.b16 %v238
    %v276 = vunpack.c.l.b16 %v239
    %v277 = vunpack.c.l.b16 %v240
    %v278 = vpack.c.b16 %v263, %v262
    %v279 = vpack.c.b16 %v265, %v264
    %v280 = vpack.c.b16 %v267, %v266
    %v281 = vpack.c.b16 %v269, %v268
    %v282 = vpack.c.b16 %v271, %v270
    %v283 = vpack.c.b16 %v273, %v272
    %v284 = vpack.c.b16 %v275, %v274
    %v285 = vpack.c.b16 %v277, %v276
    %294 = vmatpush.bf16.msra.mxu0 %v285
    %295 = vmatpush.bf16.msra.mxu0 %v284
    %296 = vmatpush.bf16.msra.mxu0 %v283
    %297 = vmatpush.bf16.msra.mxu0 %v282
    %298 = vmatpush.bf16.msra.mxu0 %v281
    %299 = vmatpush.bf16.msra.mxu0 %v280
    %300 = vmatpush.bf16.msra.mxu0 %v279
    %301 = vmatpush.bf16.msra.mxu0 %v278
    %302 = vmatmul.bf16.gmra.mxu0 %v242
    %v303 = vpop.f32.mrf.mxu0
    %v304 = vadd.f32 %v244, %v303
    %v305 = vpop.f32.mrf.mxu0
    %306 = vdwg.mxu0
    %vm307 = vcmp.ge.f32.partialorder %v304, 0.0
    %v308 = vmul.f32 %v304, 0.01
    %v309 = vsel %vm307, %v304, %v308
    %v310 = vld [vmem:[#allocation10] sm:$0xf]
    %v311 = vld [vmem:[#allocation10 + $0x4] sm:$0xf]
    %v312 = vld [vmem:[#allocation10 + $0x8] sm:$0xf]
    %v313 = vld [vmem:[#allocation10 + $0xc] sm:$0xf]
    %v314 = vld [vmem:[#allocation10 + $0x10] sm:$0xf]
    %v315 = vld [vmem:[#allocation10 + $0x14] sm:$0xf]
    %v316 = vld [vmem:[#allocation10 + $0x18] sm:$0xf]
    %v317 = vld [vmem:[#allocation10 + $0x1c] sm:$0xf]
    %v318 = vld [vmem:[#allocation10 + $0x20] sm:$0xf]
    %v319 = vld [vmem:[#allocation10 + $0x24] sm:$0xf]
    %v320 = vld [vmem:[#allocation10 + $0x28] sm:$0xf]
    %v321 = vld [vmem:[#allocation10 + $0x2c] sm:$0xf]
    %v322 = vld [vmem:[#allocation10 + $0x30] sm:$0xf]
    %v323 = vld [vmem:[#allocation10 + $0x34] sm:$0xf]
    %v324 = vld [vmem:[#allocation10 + $0x38] sm:$0xf]
    %v325 = vld [vmem:[#allocation10 + $0x3c] sm:$0xf]
    %v326 = vld [vmem:[%s6] sm:$0x1]
    %v327 = vpack.c.bf16 %v309, %v309
    %v329 = vperm.slane %v326, 0
    %v347 = vunpack.c.l.b16 %v310
    %v348 = vunpack.c.l.b16 %v311
    %v349 = vunpack.c.l.b16 %v312
    %v350 = vunpack.c.l.b16 %v313
    %v351 = vunpack.c.l.b16 %v314
    %v352 = vunpack.c.l.b16 %v315
    %v353 = vunpack.c.l.b16 %v316
    %v354 = vunpack.c.l.b16 %v317
    %v355 = vunpack.c.l.b16 %v318
    %v356 = vunpack.c.l.b16 %v319
    %v357 = vunpack.c.l.b16 %v320
    %v358 = vunpack.c.l.b16 %v321
    %v359 = vunpack.c.l.b16 %v322
    %v360 = vunpack.c.l.b16 %v323
    %v361 = vunpack.c.l.b16 %v324
    %v362 = vunpack.c.l.b16 %v325
    %v363 = vpack.c.b16 %v348, %v347
    %v364 = vpack.c.b16 %v350, %v349
    %v365 = vpack.c.b16 %v352, %v351
    %v366 = vpack.c.b16 %v354, %v353
    %v367 = vpack.c.b16 %v356, %v355
    %v368 = vpack.c.b16 %v358, %v357
    %v369 = vpack.c.b16 %v360, %v359
    %v370 = vpack.c.b16 %v362, %v361
    %379 = vmatpush.bf16.msra.mxu0 %v370
    %380 = vmatpush.bf16.msra.mxu0 %v369
    %381 = vmatpush.bf16.msra.mxu0 %v368
    %382 = vmatpush.bf16.msra.mxu0 %v367
    %383 = vmatpush.bf16.msra.mxu0 %v366
    %384 = vmatpush.bf16.msra.mxu0 %v365
    %385 = vmatpush.bf16.msra.mxu0 %v364
    %386 = vmatpush.bf16.msra.mxu0 %v363
    %387 = vmatmul.bf16.gmra.mxu0 %v327
    %v388 = vpop.f32.mrf.mxu0
    %v389 = vadd.f32 %v329, %v388
    %v390 = vpop.f32.mrf.mxu0
    %391 = vdwg.mxu0
    %v392 = vld [vmem:[#allocation11] sm:$0xff]
    %v393 = vld [vmem:[#allocation11 + $0x8] sm:$0xff]
    %v394 = vld [vmem:[#allocation11 + $0x10] sm:$0xff]
    %v395 = vld [vmem:[#allocation11 + $0x18] sm:$0xff]
    %v396 = vld [vmem:[#allocation11 + $0x20] sm:$0xff]
    %v397 = vld [vmem:[#allocation11 + $0x28] sm:$0xff]
    %v398 = vld [vmem:[#allocation11 + $0x30] sm:$0xff]
    %v399 = vld [vmem:[#allocation11 + $0x38] sm:$0xff]
    %v400 = vld [vmem:[#allocation11 + $0x40] sm:$0xff]
    %v401 = vld [vmem:[#allocation11 + $0x48] sm:$0xff]
    %v402 = vld [vmem:[#allocation11 + $0x50] sm:$0xff]
    %v403 = vld [vmem:[#allocation11 + $0x58] sm:$0xff]
    %v404 = vld [vmem:[#allocation11 + $0x60] sm:$0xff]
    %v405 = vld [vmem:[#allocation11 + $0x68] sm:$0xff]
    %v406 = vld [vmem:[#allocation11 + $0x70] sm:$0xff]
    %v407 = vld [vmem:[#allocation11 + $0x78] sm:$0xff]
    %v408 = vld [vmem:[%s8] sm:$0x3]
    %v409 = vpack.c.bf16 %v389, %v389
    %v411 = vperm.slane %v408, 0
    %v412 = vperm.slane %v408, 1
    %v431 = vunpack.c.l.b16 %v392
    %v432 = vunpack.c.h.b16 %v392
    %v433 = vunpack.c.l.b16 %v393
    %v434 = vunpack.c.h.b16 %v393
    %v435 = vunpack.c.l.b16 %v394
    %v436 = vunpack.c.h.b16 %v394
    %v437 = vunpack.c.l.b16 %v395
    %v438 = vunpack.c.h.b16 %v395
    %v439 = vunpack.c.l.b16 %v396
    %v440 = vunpack.c.h.b16 %v396
    %v441 = vunpack.c.l.b16 %v397
    %v442 = vunpack.c.h.b16 %v397
    %v443 = vunpack.c.l.b16 %v398
    %v444 = vunpack.c.h.b16 %v398
    %v445 = vunpack.c.l.b16 %v399
    %v446 = vunpack.c.h.b16 %v399
    %v447 = vunpack.c.l.b16 %v400
    %v448 = vunpack.c.h.b16 %v400
    %v449 = vunpack.c.l.b16 %v401
    %v450 = vunpack.c.h.b16 %v401
    %v451 = vunpack.c.l.b16 %v402
    %v452 = vunpack.c.h.b16 %v402
    %v453 = vunpack.c.l.b16 %v403
    %v454 = vunpack.c.h.b16 %v403
    %v455 = vunpack.c.l.b16 %v404
    %v456 = vunpack.c.h.b16 %v404
    %v457 = vunpack.c.l.b16 %v405
    %v458 = vunpack.c.h.b16 %v405
    %v459 = vunpack.c.l.b16 %v406
    %v460 = vunpack.c.h.b16 %v406
    %v461 = vunpack.c.l.b16 %v407
    %v462 = vunpack.c.h.b16 %v407
    %v463 = vpack.c.b16 %v433, %v431
    %v464 = vpack.c.b16 %v434, %v432
    %v465 = vpack.c.b16 %v437, %v435
    %v466 = vpack.c.b16 %v438, %v436
    %v467 = vpack.c.b16 %v441, %v439
    %v468 = vpack.c.b16 %v442, %v440
    %v469 = vpack.c.b16 %v445, %v443
    %v470 = vpack.c.b16 %v446, %v444
    %v471 = vpack.c.b16 %v449, %v447
    %v472 = vpack.c.b16 %v450, %v448
    %v473 = vpack.c.b16 %v453, %v451
    %v474 = vpack.c.b16 %v454, %v452
    %v475 = vpack.c.b16 %v457, %v455
    %v476 = vpack.c.b16 %v458, %v456
    %v477 = vpack.c.b16 %v461, %v459
    %v478 = vpack.c.b16 %v462, %v460
    %495 = vmatpush.bf16.msra.mxu0 %v477
    %496 = vmatpush.bf16.msra.mxu0 %v475
    %497 = vmatpush.bf16.msra.mxu0 %v473
    %498 = vmatpush.bf16.msra.mxu0 %v471
    %499 = vmatpush.bf16.msra.mxu0 %v469
    %500 = vmatpush.bf16.msra.mxu0 %v467
    %501 = vmatpush.bf16.msra.mxu0 %v465
    %502 = vmatpush.bf16.msra.mxu0 %v463
    %503 = vmatmul.bf16.gmra.mxu0 %v409
    %v504 = vpop.f32.mrf.mxu0
    %v505 = vadd.f32 %v411, %v504
    %v506 = vpop.f32.mrf.mxu0
    %507 = vdwg.mxu0
    %508 = vmatpush.bf16.msra.mxu0 %v478
    %509 = vmatpush.bf16.msra.mxu0 %v476
    %510 = vmatpush.bf16.msra.mxu0 %v474
    %511 = vmatpush.bf16.msra.mxu0 %v472
    %512 = vmatpush.bf16.msra.mxu0 %v470
    %513 = vmatpush.bf16.msra.mxu0 %v468
    %514 = vmatpush.bf16.msra.mxu0 %v466
    %515 = vmatpush.bf16.msra.mxu0 %v464
    %516 = vmatmul.bf16.gmra.mxu0 %v409
    %v517 = vpop.f32.mrf.mxu0
    %v518 = vadd.f32 %v412, %v517
    %v519 = vpop.f32.mrf.mxu0
    %520 = vdwg.mxu0
    %vm521 = vcmp.ge.f32.partialorder %v505, 0.0
    %vm522 = vcmp.ge.f32.partialorder %v518, 0.0
    %v523 = vmul.f32 %v505, 0.01
    %v524 = vmul.f32 %v518, 0.01
    %v525 = vsel %vm521, %v505, %v523
    %v526 = vsel %vm522, %v518, %v524
    %v527 = vld [vmem:[#allocation13] sm:$0xf]
    %v528 = vld [vmem:[#allocation13 + $0x4] sm:$0xf]
    %v529 = vld [vmem:[#allocation13 + $0x8] sm:$0xf]
    %v530 = vld [vmem:[#allocation13 + $0xc] sm:$0xf]
    %v531 = vld [vmem:[#allocation13 + $0x10] sm:$0xf]
    %v532 = vld [vmem:[#allocation13 + $0x14] sm:$0xf]
    %v533 = vld [vmem:[#allocation13 + $0x18] sm:$0xf]
    %v534 = vld [vmem:[#allocation13 + $0x1c] sm:$0xf]
    %v535 = vld [vmem:[#allocation13 + $0x20] sm:$0xf]
    %v536 = vld [vmem:[#allocation13 + $0x24] sm:$0xf]
    %v537 = vld [vmem:[#allocation13 + $0x28] sm:$0xf]
    %v538 = vld [vmem:[#allocation13 + $0x2c] sm:$0xf]
    %v539 = vld [vmem:[#allocation13 + $0x30] sm:$0xf]
    %v540 = vld [vmem:[#allocation13 + $0x34] sm:$0xf]
    %v541 = vld [vmem:[#allocation13 + $0x38] sm:$0xf]
    %v542 = vld [vmem:[#allocation13 + $0x3c] sm:$0xf]
    %v543 = vld [vmem:[%s10] sm:$0x1]
    %v544 = vpack.c.bf16 %v526, %v526
    %v546 = vperm.slane %v543, 0
    %v564 = vunpack.c.l.b16 %v527
    %v565 = vunpack.c.l.b16 %v528
    %v566 = vunpack.c.l.b16 %v529
    %v567 = vunpack.c.l.b16 %v530
    %v568 = vunpack.c.l.b16 %v531
    %v569 = vunpack.c.l.b16 %v532
    %v570 = vunpack.c.l.b16 %v533
    %v571 = vunpack.c.l.b16 %v534
    %v572 = vunpack.c.l.b16 %v535
    %v573 = vunpack.c.l.b16 %v536
    %v574 = vunpack.c.l.b16 %v537
    %v575 = vunpack.c.l.b16 %v538
    %v576 = vunpack.c.l.b16 %v539
    %v577 = vunpack.c.l.b16 %v540
    %v578 = vunpack.c.l.b16 %v541
    %v579 = vunpack.c.l.b16 %v542
    %v580 = vpack.c.b16 %v565, %v564
    %v581 = vpack.c.b16 %v567, %v566
    %v582 = vpack.c.b16 %v569, %v568
    %v583 = vpack.c.b16 %v571, %v570
    %v584 = vpack.c.b16 %v573, %v572
    %v585 = vpack.c.b16 %v575, %v574
    %v586 = vpack.c.b16 %v577, %v576
    %v587 = vpack.c.b16 %v579, %v578
    %596 = vmatpush.bf16.msra.mxu0 %v587
    %597 = vmatpush.bf16.msra.mxu0 %v586
    %598 = vmatpush.bf16.msra.mxu0 %v585
    %599 = vmatpush.bf16.msra.mxu0 %v584
    %600 = vmatpush.bf16.msra.mxu0 %v583
    %601 = vmatpush.bf16.msra.mxu0 %v582
    %602 = vmatpush.bf16.msra.mxu0 %v581
    %603 = vmatpush.bf16.msra.mxu0 %v580
    %604 = vmatmul.bf16.gmra.mxu0 %v544
    %v605 = vpop.f32.mrf.mxu0
    %v606 = vadd.f32 %v546, %v605
    %v607 = vpop.f32.mrf.mxu0
    %608 = vdwg.mxu0
    %609 = vst [vmem:[#allocation18] sm:$0xff] %v606
    %v610 = vld [vmem:[#allocation14] sm:$0xf]
    %v611 = vld [vmem:[#allocation14 + $0x4] sm:$0xf]
    %v612 = vld [vmem:[#allocation14 + $0x8] sm:$0xf]
    %v613 = vld [vmem:[#allocation14 + $0xc] sm:$0xf]
    %v614 = vld [vmem:[#allocation14 + $0x10] sm:$0xf]
    %v615 = vld [vmem:[#allocation14 + $0x14] sm:$0xf]
    %v616 = vld [vmem:[#allocation14 + $0x18] sm:$0xf]
    %v617 = vld [vmem:[#allocation14 + $0x1c] sm:$0xf]
    %v618 = vld [vmem:[#allocation14 + $0x20] sm:$0xf]
    %v619 = vld [vmem:[#allocation14 + $0x24] sm:$0xf]
    %v620 = vld [vmem:[#allocation14 + $0x28] sm:$0xf]
    %v621 = vld [vmem:[#allocation14 + $0x2c] sm:$0xf]
    %v622 = vld [vmem:[#allocation14 + $0x30] sm:$0xf]
    %v623 = vld [vmem:[#allocation14 + $0x34] sm:$0xf]
    %v624 = vld [vmem:[#allocation14 + $0x38] sm:$0xf]
    %v625 = vld [vmem:[#allocation14 + $0x3c] sm:$0xf]
    %v626 = vld [vmem:[%s12] sm:$0x1]
    %v627 = vpack.c.bf16 %v525, %v525
    %v629 = vperm.slane %v626, 0
    %v647 = vunpack.c.l.b16 %v610
    %v648 = vunpack.c.l.b16 %v611
    %v649 = vunpack.c.l.b16 %v612
    %v650 = vunpack.c.l.b16 %v613
    %v651 = vunpack.c.l.b16 %v614
    %v652 = vunpack.c.l.b16 %v615
    %v653 = vunpack.c.l.b16 %v616
    %v654 = vunpack.c.l.b16 %v617
    %v655 = vunpack.c.l.b16 %v618
    %v656 = vunpack.c.l.b16 %v619
    %v657 = vunpack.c.l.b16 %v620
    %v658 = vunpack.c.l.b16 %v621
    %v659 = vunpack.c.l.b16 %v622
    %v660 = vunpack.c.l.b16 %v623
    %v661 = vunpack.c.l.b16 %v624
    %v662 = vunpack.c.l.b16 %v625
    %v663 = vpack.c.b16 %v648, %v647
    %v664 = vpack.c.b16 %v650, %v649
    %v665 = vpack.c.b16 %v652, %v651
    %v666 = vpack.c.b16 %v654, %v653
    %v667 = vpack.c.b16 %v656, %v655
    %v668 = vpack.c.b16 %v658, %v657
    %v669 = vpack.c.b16 %v660, %v659
    %v670 = vpack.c.b16 %v662, %v661
    %679 = vmatpush.bf16.msra.mxu0 %v670
    %680 = vmatpush.bf16.msra.mxu0 %v669
    %681 = vmatpush.bf16.msra.mxu0 %v668
    %682 = vmatpush.bf16.msra.mxu0 %v667
    %683 = vmatpush.bf16.msra.mxu0 %v666
    %684 = vmatpush.bf16.msra.mxu0 %v665
    %685 = vmatpush.bf16.msra.mxu0 %v664
    %686 = vmatpush.bf16.msra.mxu0 %v663
    %687 = vmatmul.bf16.gmra.mxu0 %v627
    %v688 = vpop.f32.mrf.mxu0
    %v689 = vadd.f32 %v629, %v688
    %v690 = vpop.f32.mrf.mxu0
    %691 = vdwg.mxu0
    %vm692 = vcmp.ge.f32.partialorder %v689, 0.0
    %v693 = vmul.f32 %v689, 0.01
    %v694 = vsel %vm692, %v689, %v693
    %v695 = vld [vmem:[#allocation16] sm:$0xf]
    %v696 = vld [vmem:[#allocation16 + $0x4] sm:$0xf]
    %v697 = vld [vmem:[#allocation16 + $0x8] sm:$0xf]
    %v698 = vld [vmem:[#allocation16 + $0xc] sm:$0xf]
    %v699 = vld [vmem:[#allocation16 + $0x10] sm:$0xf]
    %v700 = vld [vmem:[#allocation16 + $0x14] sm:$0xf]
    %v701 = vld [vmem:[#allocation16 + $0x18] sm:$0xf]
    %v702 = vld [vmem:[#allocation16 + $0x1c] sm:$0xf]
    %v703 = vld [vmem:[#allocation16 + $0x20] sm:$0xf]
    %v704 = vld [vmem:[#allocation16 + $0x24] sm:$0xf]
    %v705 = vld [vmem:[#allocation16 + $0x28] sm:$0xf]
    %v706 = vld [vmem:[#allocation16 + $0x2c] sm:$0xf]
    %v707 = vld [vmem:[#allocation16 + $0x30] sm:$0xf]
    %v708 = vld [vmem:[#allocation16 + $0x34] sm:$0xf]
    %v709 = vld [vmem:[#allocation16 + $0x38] sm:$0xf]
    %v710 = vld [vmem:[#allocation16 + $0x3c] sm:$0xf]
    %v711 = vld [vmem:[%s14] sm:$0x1]
    %v712 = vpack.c.bf16 %v694, %v694
    %v714 = vperm.slane %v711, 0
    %v732 = vunpack.c.l.b16 %v695
    %v733 = vunpack.c.l.b16 %v696
    %v734 = vunpack.c.l.b16 %v697
    %v735 = vunpack.c.l.b16 %v698
    %v736 = vunpack.c.l.b16 %v699
    %v737 = vunpack.c.l.b16 %v700
    %v738 = vunpack.c.l.b16 %v701
    %v739 = vunpack.c.l.b16 %v702
    %v740 = vunpack.c.l.b16 %v703
    %v741 = vunpack.c.l.b16 %v704
    %v742 = vunpack.c.l.b16 %v705
    %v743 = vunpack.c.l.b16 %v706
    %v744 = vunpack.c.l.b16 %v707
    %v745 = vunpack.c.l.b16 %v708
    %v746 = vunpack.c.l.b16 %v709
    %v747 = vunpack.c.l.b16 %v710
    %v748 = vpack.c.b16 %v733, %v732
    %v749 = vpack.c.b16 %v735, %v734
    %v750 = vpack.c.b16 %v737, %v736
    %v751 = vpack.c.b16 %v739, %v738
    %v752 = vpack.c.b16 %v741, %v740
    %v753 = vpack.c.b16 %v743, %v742
    %v754 = vpack.c.b16 %v745, %v744
    %v755 = vpack.c.b16 %v747, %v746
    %764 = vmatpush.bf16.msra.mxu0 %v755
    %765 = vmatpush.bf16.msra.mxu0 %v754
    %766 = vmatpush.bf16.msra.mxu0 %v753
    %767 = vmatpush.bf16.msra.mxu0 %v752
    %768 = vmatpush.bf16.msra.mxu0 %v751
    %769 = vmatpush.bf16.msra.mxu0 %v750
    %770 = vmatpush.bf16.msra.mxu0 %v749
    %771 = vmatpush.bf16.msra.mxu0 %v748
    %772 = vmatmul.bf16.gmra.mxu0 %v712
    %v773 = vpop.f32.mrf.mxu0
    %v774 = vadd.f32 %v714, %v773
    %v775 = vpop.f32.mrf.mxu0
    %776 = vdwg.mxu0
    %777 = vst [vmem:[#allocation17] sm:$0xff] %v774
    // Predicated region
    $region98: #{tpu_custom_call.1} parent=1 // pred_check
      _
    $region99: #{tpu_custom_call.1} parent=1 // pred_check_branch
      %779 = sbr.rel (0) target = $region101
    $region100: #{tpu_custom_call.1} parent=1 // pred_region
      %781 = vsyncadd [#allocation4], 0
      %s783 = sshll.u32 [#allocation17], 4
      %s784 = int_to_ptr.vmem [resolvable:$true] %s783
      %s785 = sshll.u32 %s15, 4
      %s786 = int_to_ptr.hbm [resolvable:$true] %s785
      %788 = dma.vmem_to_hbm [thread:$0]  %s784, 128, %s786, [#allocation4]
    $region101: #{tpu_custom_call.1} parent=1 // pred_fallthru
      _
    // Predicated region
    $region102: #{tpu_custom_call.1} parent=1 // pred_check
      _
    $region103: #{tpu_custom_call.1} parent=1 // pred_check_branch
      %790 = sbr.rel (0) target = $region105
    $region104: #{tpu_custom_call.1} parent=1 // pred_region
      %792 = vsyncadd [#allocation19], 0
      %s794 = sshll.u32 [#allocation18], 4
      %s795 = int_to_ptr.vmem [resolvable:$true] %s794
      %s796 = sshll.u32 %s16, 4
      %s797 = int_to_ptr.hbm [resolvable:$true] %s796
      %799 = dma.vmem_to_hbm [thread:$0]  %s795, 128, %s797, [#allocation19]
    $region105: #{tpu_custom_call.1} parent=1 // pred_fallthru
      _
    // Predicated region
    $region106: #{tpu_custom_call.1} parent=1 // pred_check
      _
    $region107: #{tpu_custom_call.1} parent=1 // pred_check_branch
      %801 = sbr.rel (0) target = $region109
    $region108: #{tpu_custom_call.1} parent=1 // pred_region
      %803 = dma.done [#allocation4], 128
    $region109: #{tpu_custom_call.1} parent=1 // pred_fallthru
      _
    // Predicated region
    $region110: #{tpu_custom_call.1} parent=1 // pred_check
      _
    $region111: #{tpu_custom_call.1} parent=1 // pred_check_branch
      %805 = sbr.rel (0) target = $region113
    $region112: #{tpu_custom_call.1} parent=1 // pred_region
      %807 = dma.done [#allocation19], 128
    $region113: #{tpu_custom_call.1} parent=1 // pred_fallthru
      _
    %808 = vsyncpa [#allocation3], 1
    %809 = vsyncpa [#allocation6], 1
    %810 = vsyncpa [#allocation9], 1
    %811 = vsyncpa [#allocation12], 1
    %812 = vsyncpa [#allocation15], 1
    %813 = vsyncpa [#allocation4], 1
    %814 = vsyncpa [#allocation19], 1

// kernel: tpu_custom_call.1
$region0: #{tpu_custom_call.1}
  #allocation0 [shape = 'u32[]', space=smem, size = 0x4, offset = 0x4, fixed_abs, tag = 'smem constant byte address 0x4 - core index']
  #allocation1 [shape = 'u32[72,128]{1,0:T(1,128)}', space=vmem, size = 0x9000, scoped, tag = 'internal scratch']
  %s0 = inlined_call_operand.hbm [shape: f32[8,16], index: 0, kind: input, shape index: {}]
  %s1 = inlined_call_operand.hbm [shape: bf16[16,128], index: 1, kind: input, shape index: {}]
  %s2 = inlined_call_operand.vmem [shape: f32[1,128], index: 2, kind: input, shape index: {}]
  %s3 = inlined_call_operand.hbm [shape: bf16[128,128], index: 3, kind: input, shape index: {}]
  %s4 = inlined_call_operand.hbm [shape: f32[1,128], index: 4, kind: input, shape index: {}]
  %s5 = inlined_call_operand.hbm [shape: bf16[128,128], index: 5, kind: input, shape index: {}]
  %s6 = inlined_call_operand.vmem [shape: f32[1,128], index: 6, kind: input, shape index: {}]
  %s7 = inlined_call_operand.hbm [shape: bf16[128,256], index: 7, kind: input, shape index: {}]
  %s8 = inlined_call_operand.vmem [shape: f32[1,256], index: 8, kind: input, shape index: {}]
  %s9 = inlined_call_operand.hbm [shape: bf16[128,128], index: 9, kind: input, shape index: {}]
  %s10 = inlined_call_operand.vmem [shape: f32[1,128], index: 10, kind: input, shape index: {}]
  %s11 = inlined_call_operand.hbm [shape: bf16[128,128], index: 11, kind: input, shape index: {}]
  %s12 = inlined_call_operand.vmem [shape: f32[1,128], index: 12, kind: input, shape index: {}]
  %s13 = inlined_call_operand.hbm [shape: bf16[128,128], index: 13, kind: input, shape index: {}]
  %s14 = inlined_call_operand.vmem [shape: f32[1,128], index: 14, kind: input, shape index: {}]
  %s15 = inlined_call_operand.hbm [shape: f32[8,128], index: 15, kind: output, shape index: {0}]
  %s16 = inlined_call_operand.hbm [shape: f32[8,128], index: 16, kind: output, shape index: {1}]
  %17 = xla_tuple %s15, %s16
  %s18 = sld [smem:[#allocation0]]
  $region114: #{tpu_custom_call.1} parent=0
    _
  %s20 = ssub.s32 1, %s18
  %s21 = scalar_select 0, %s20, %s18
  $region1: #{tpu_custom_call.1} parent=0
    #allocation2 [shape = 'u8[4096]{0}', space=vmem, size = 0x1000, scoped, tag = 'input window, operand 0, single buffered']
    #allocation3 [shape = 's32[1]{0}', space=sflag, size = 0x4, scoped, tag = 'scoped memory for tpu_custom_call.1']
    #allocation4 [shape = 's32[1]{0}', space=sflag, size = 0x4, scoped, tag = 'scoped memory for tpu_custom_call.1']
    #allocation5 [shape = 'u8[4096]{0}', space=vmem, size = 0x1000, scoped, tag = 'input window, operand 1, single buffered']
    #allocation6 [shape = 's32[1]{0}', space=sflag, size = 0x4, scoped, tag = 'scoped memory for tpu_custom_call.1']
    #allocation7 [shape = 'u8[32768]{0}', space=vmem, size = 0x8000, scoped, tag = 'input window, operand 3, single buffered']
    #allocation8 [shape = 'u8[512]{0}', space=vmem, size = 0x400, scoped, tag = 'input window, operand 4, single buffered']
    #allocation9 [shape = 's32[1]{0}', space=sflag, size = 0x4, scoped, tag = 'scoped memory for tpu_custom_call.1']
    #allocation10 [shape = 'u8[32768]{0}', space=vmem, size = 0x8000, scoped, tag = 'input window, operand 5, single buffered']
    #allocation11 [shape = 'u8[65536]{0}', space=vmem, size = 0x10000, scoped, tag = 'input window, operand 7, single buffered']
    #allocation12 [shape = 's32[1]{0}', space=sflag, size = 0x4, scoped, tag = 'scoped memory for tpu_custom_call.1']
    #allocation13 [shape = 'u8[32768]{0}', space=vmem, size = 0x8000, scoped, tag = 'input window, operand 9, single buffered']
    #allocation14 [shape = 'u8[32768]{0}', space=vmem, size = 0x8000, scoped, tag = 'input window, operand 11, single buffered']
    #allocation15 [shape = 's32[1]{0}', space=sflag, size = 0x4, scoped, tag = 'scoped memory for tpu_custom_call.1']
    #allocation16 [shape = 'u8[32768]{0}', space=vmem, size = 0x8000, scoped, tag = 'input window, operand 13, single buffered']
    #allocation17 [shape = 'u8[4096]{0}', space=vmem, size = 0x1000, scoped, tag = 'output window, operand 0, single buffered']
    #allocation18 [shape = 'u8[4096]{0}', space=vmem, size = 0x1000, scoped, tag = 'output window, operand 1, single buffered']
    #allocation19 [shape = 's32[1]{0}', space=sflag, size = 0x4, scoped, tag = 'scoped memory for tpu_custom_call.1']
    %22 = vsyncpa [#allocation3], 0
    %23 = vsyncpa [#allocation6], 0
    %24 = vsyncpa [#allocation9], 0
    %25 = vsyncpa [#allocation12], 0
    %26 = vsyncpa [#allocation15], 0
    %27 = vsyncpa [#allocation4], 0
    %28 = vsyncpa [#allocation19], 0
    // Predicated region
    $region2: #{tpu_custom_call.1} parent=1 // pred_check
      _
    $region3: #{tpu_custom_call.1} parent=1 // pred_check_branch
      %30 = sbr.rel (0) target = $region5
    $region4: #{tpu_custom_call.1} parent=1 // pred_region
      %32 = vsyncadd [#allocation3], 0
      %s34 = sshll.u32 %s0, 4
      %s35 = int_to_ptr.hbm [resolvable:$true] %s34
      %s36 = sshll.u32 [#allocation2], 4
      %s37 = int_to_ptr.vmem [resolvable:$true] %s36
      %39 = dma.hbm_to_vmem [thread:$0]  %s35, 128, %s37, [#allocation3]
    $region5: #{tpu_custom_call.1} parent=1 // pred_fallthru
      _
    // Predicated region
    $region6: #{tpu_custom_call.1} parent=1 // pred_check
      _
    $region7: #{tpu_custom_call.1} parent=1 // pred_check_branch
      %41 = sbr.rel (0) target = $region9
    $region8: #{tpu_custom_call.1} parent=1 // pred_region
      %43 = vsyncadd [#allocation6], 0
      %s44 = sshll.u32 %s1, 4
      %s45 = int_to_ptr.hbm [resolvable:$true] %s44
      %s46 = sshll.u32 [#allocation5], 4
      %s47 = int_to_ptr.vmem [resolvable:$true] %s46
      %52 = dma.hbm_to_vmem [thread:$0]  %s45, 128, %s47, [#allocation6], 64, 64, 4
    $region9: #{tpu_custom_call.1} parent=1 // pred_fallthru
      _
    // Predicated region
    $region10: #{tpu_custom_call.1} parent=1 // pred_check
      _
    $region11: #{tpu_custom_call.1} parent=1 // pred_check_branch
      %54 = sbr.rel (0) target = $region13
    $region12: #{tpu_custom_call.1} parent=1 // pred_region
      _
    $region13: #{tpu_custom_call.1} parent=1 // pred_fallthru
      _
    // Predicated region
    $region14: #{tpu_custom_call.1} parent=1 // pred_check
      _
    $region15: #{tpu_custom_call.1} parent=1 // pred_check_branch
      %56 = sbr.rel (0) target = $region17
    $region16: #{tpu_custom_call.1} parent=1 // pred_region
      %58 = vsyncadd [#allocation6], 0
      %s59 = sshll.u32 %s3, 4
      %s60 = int_to_ptr.hbm [resolvable:$true] %s59
      %s61 = sshll.u32 [#allocation7], 4
      %s62 = int_to_ptr.vmem [resolvable:$true] %s61
      %67 = dma.hbm_to_vmem [thread:$0]  %s60, 1024, %s62, [#allocation6], 64, 64, 4
    $region17: #{tpu_custom_call.1} parent=1 // pred_fallthru
      _
    // Predicated region
    $region18: #{tpu_custom_call.1} parent=1 // pred_check
      _
    $region19: #{tpu_custom_call.1} parent=1 // pred_check_branch
      %69 = sbr.rel (0) target = $region21
    $region20: #{tpu_custom_call.1} parent=1 // pred_region
      %71 = vsyncadd [#allocation9], 0
      %s73 = sshll.u32 %s4, 4
      %s74 = int_to_ptr.hbm [resolvable:$true] %s73
      %s75 = sshll.u32 [#allocation8], 4
      %s76 = int_to_ptr.vmem [resolvable:$true] %s75
      %78 = dma.hbm_to_vmem [thread:$0]  %s74, 16, %s76, [#allocation9]
    $region21: #{tpu_custom_call.1} parent=1 // pred_fallthru
      _
    // Predicated region
    $region22: #{tpu_custom_call.1} parent=1 // pred_check
      _
    $region23: #{tpu_custom_call.1} parent=1 // pred_check_branch
      %80 = sbr.rel (0) target = $region25
    $region24: #{tpu_custom_call.1} parent=1 // pred_region
      %82 = vsyncadd [#allocation9], 0
      %s83 = sshll.u32 %s5, 4
      %s84 = int_to_ptr.hbm [resolvable:$true] %s83
      %s85 = sshll.u32 [#allocation10], 4
      %s86 = int_to_ptr.vmem [resolvable:$true] %s85
      %91 = dma.hbm_to_vmem [thread:$0]  %s84, 1024, %s86, [#allocation9], 64, 64, 4
    $region25: #{tpu_custom_call.1} parent=1 // pred_fallthru
      _
    // Predicated region
    $region26: #{tpu_custom_call.1} parent=1 // pred_check
      _
    $region27: #{tpu_custom_call.1} parent=1 // pred_check_branch
      %93 = sbr.rel (0) target = $region29
    $region28: #{tpu_custom_call.1} parent=1 // pred_region
      _
    $region29: #{tpu_custom_call.1} parent=1 // pred_fallthru
      _
    // Predicated region
    $region30: #{tpu_custom_call.1} parent=1 // pred_check
      _
    $region31: #{tpu_custom_call.1} parent=1 // pred_check_branch
      %95 = sbr.rel (0) target = $region33
    $region32: #{tpu_custom_call.1} parent=1 // pred_region
      %97 = vsyncadd [#allocation12], 0
      %s98 = sshll.u32 %s7, 4
      %s99 = int_to_ptr.hbm [resolvable:$true] %s98
      %s100 = sshll.u32 [#allocation11], 4
      %s101 = int_to_ptr.vmem [resolvable:$true] %s100
      %106 = dma.hbm_to_vmem [thread:$0]  %s99, 2048, %s101, [#allocation12], 128, 128, 8
    $region33: #{tpu_custom_call.1} parent=1 // pred_fallthru
      _
    // Predicated region
    $region34: #{tpu_custom_call.1} parent=1 // pred_check
      _
    $region35: #{tpu_custom_call.1} parent=1 // pred_check_branch
      %108 = sbr.rel (0) target = $region37
    $region36: #{tpu_custom_call.1} parent=1 // pred_region
      _
    $region37: #{tpu_custom_call.1} parent=1 // pred_fallthru
      _
    // Predicated region
    $region38: #{tpu_custom_call.1} parent=1 // pred_check
      _
    $region39: #{tpu_custom_call.1} parent=1 // pred_check_branch
      %110 = sbr.rel (0) target = $region41
    $region40: #{tpu_custom_call.1} parent=1 // pred_region
      %112 = vsyncadd [#allocation12], 0
      %s113 = sshll.u32 %s9, 4
      %s114 = int_to_ptr.hbm [resolvable:$true] %s113
      %s115 = sshll.u32 [#allocation13], 4
      %s116 = int_to_ptr.vmem [resolvable:$true] %s115
      %121 = dma.hbm_to_vmem [thread:$0]  %s114, 1024, %s116, [#allocation12], 64, 64, 4
    $region41: #{tpu_custom_call.1} parent=1 // pred_fallthru
      _
    // Predicated region
    $region42: #{tpu_custom_call.1} parent=1 // pred_check
      _
    $region43: #{tpu_custom_call.1} parent=1 // pred_check_branch
      %123 = sbr.rel (0) target = $region45
    $region44: #{tpu_custom_call.1} parent=1 // pred_region
      _
    $region45: #{tpu_custom_call.1} parent=1 // pred_fallthru
      _
    // Predicated region
    $region46: #{tpu_custom_call.1} parent=1 // pred_check
      _
    $region47: #{tpu_custom_call.1} parent=1 // pred_check_branch
      %125 = sbr.rel (0) target = $region49
    $region48: #{tpu_custom_call.1} parent=1 // pred_region
      %127 = vsyncadd [#allocation15], 0
      %s128 = sshll.u32 %s11, 4
      %s129 = int_to_ptr.hbm [resolvable:$true] %s128
      %s130 = sshll.u32 [#allocation14], 4
      %s131 = int_to_ptr.vmem [resolvable:$true] %s130
      %136 = dma.hbm_to_vmem [thread:$0]  %s129, 1024, %s131, [#allocation15], 64, 64, 4
    $region49: #{tpu_custom_call.1} parent=1 // pred_fallthru
      _
    // Predicated region
    $region50: #{tpu_custom_call.1} parent=1 // pred_check
      _
    $region51: #{tpu_custom_call.1} parent=1 // pred_check_branch
      %138 = sbr.rel (0) target = $region53
    $region52: #{tpu_custom_call.1} parent=1 // pred_region
      _
    $region53: #{tpu_custom_call.1} parent=1 // pred_fallthru
      _
    // Predicated region
    $region54: #{tpu_custom_call.1} parent=1 // pred_check
      _
    $region55: #{tpu_custom_call.1} parent=1 // pred_check_branch
      %140 = sbr.rel (0) target = $region57
    $region56: #{tpu_custom_call.1} parent=1 // pred_region
      %142 = vsyncadd [#allocation15], 0
      %s143 = sshll.u32 %s13, 4
      %s144 = int_to_ptr.hbm [resolvable:$true] %s143
      %s145 = sshll.u32 [#allocation16], 4
      %s146 = int_to_ptr.vmem [resolvable:$true] %s145
      %151 = dma.hbm_to_vmem [thread:$0]  %s144, 1024, %s146, [#allocation15], 64, 64, 4
    $region57: #{tpu_custom_call.1} parent=1 // pred_fallthru
      _
    // Predicated region
    $region58: #{tpu_custom_call.1} parent=1 // pred_check
      _
    $region59: #{tpu_custom_call.1} parent=1 // pred_check_branch
      %153 = sbr.rel (0) target = $region61
    $region60: #{tpu_custom_call.1} parent=1 // pred_region
      _
    $region61: #{tpu_custom_call.1} parent=1 // pred_fallthru
      _
    // Predicated region
    $region62: #{tpu_custom_call.1} parent=1 // pred_check
      _
    $region63: #{tpu_custom_call.1} parent=1 // pred_check_branch
      %155 = sbr.rel (0) target = $region65
    $region64: #{tpu_custom_call.1} parent=1 // pred_region
      %157 = dma.done [#allocation3], 128
    $region65: #{tpu_custom_call.1} parent=1 // pred_fallthru
      _
    // Predicated region
    $region66: #{tpu_custom_call.1} parent=1 // pred_check
      _
    $region67: #{tpu_custom_call.1} parent=1 // pred_check_branch
      %159 = sbr.rel (0) target = $region69
    $region68: #{tpu_custom_call.1} parent=1 // pred_region
      %161 = dma.done [#allocation6], 128
    $region69: #{tpu_custom_call.1} parent=1 // pred_fallthru
      _
    // Predicated region
    $region70: #{tpu_custom_call.1} parent=1 // pred_check
      _
    $region71: #{tpu_custom_call.1} parent=1 // pred_check_branch
      %163 = sbr.rel (0) target = $region73
    $region72: #{tpu_custom_call.1} parent=1 // pred_region
      %165 = dma.done [#allocation6], 1024
    $region73: #{tpu_custom_call.1} parent=1 // pred_fallthru
      _
    // Predicated region
    $region74: #{tpu_custom_call.1} parent=1 // pred_check
      _
    $region75: #{tpu_custom_call.1} parent=1 // pred_check_branch
      %167 = sbr.rel (0) target = $region77
    $region76: #{tpu_custom_call.1} parent=1 // pred_region
      %169 = dma.done [#allocation9], 16
    $region77: #{tpu_custom_call.1} parent=1 // pred_fallthru
      _
    // Predicated region
    $region78: #{tpu_custom_call.1} parent=1 // pred_check
      _
    $region79: #{tpu_custom_call.1} parent=1 // pred_check_branch
      %171 = sbr.rel (0) target = $region81
    $region80: #{tpu_custom_call.1} parent=1 // pred_region
      %173 = dma.done [#allocation9], 1024
    $region81: #{tpu_custom_call.1} parent=1 // pred_fallthru
      _
    // Predicated region
    $region82: #{tpu_custom_call.1} parent=1 // pred_check
      _
    $region83: #{tpu_custom_call.1} parent=1 // pred_check_branch
      %175 = sbr.rel (0) target = $region85
    $region84: #{tpu_custom_call.1} parent=1 // pred_region
      %177 = dma.done [#allocation12], 2048
    $region85: #{tpu_custom_call.1} parent=1 // pred_fallthru
      _
    // Predicated region
    $region86: #{tpu_custom_call.1} parent=1 // pred_check
      _
    $region87: #{tpu_custom_call.1} parent=1 // pred_check_branch
      %179 = sbr.rel (0) target = $region89
    $region88: #{tpu_custom_call.1} parent=1 // pred_region
      %181 = dma.done [#allocation12], 1024
    $region89: #{tpu_custom_call.1} parent=1 // pred_fallthru
      _
    // Predicated region
    $region90: #{tpu_custom_call.1} parent=1 // pred_check
      _
    $region91: #{tpu_custom_call.1} parent=1 // pred_check_branch
      %183 = sbr.rel (0) target = $region93
    $region92: #{tpu_custom_call.1} parent=1 // pred_region
      %185 = dma.done [#allocation15], 1024
    $region93: #{tpu_custom_call.1} parent=1 // pred_fallthru
      _
    // Predicated region
    $region94: #{tpu_custom_call.1} parent=1 // pred_check
      _
    $region95: #{tpu_custom_call.1} parent=1 // pred_check_branch
      %187 = sbr.rel (0) target = $region97
    $region96: #{tpu_custom_call.1} parent=1 // pred_region
      %189 = dma.done [#allocation15], 1024
    $region97: #{tpu_custom_call.1} parent=1 // pred_fallthru
      _
    %v191 = vld [vmem:[#allocation2] sm:$0xff]
    %v192 = vld [vmem:[#allocation5] sm:$0xf]
    %v193 = vld [vmem:[#allocation5 + $0x4] sm:$0xf]
    %v194 = vld [vmem:[%s2] sm:$0x1]
    %v195 = vpack.c.bf16 %v191, %v191
    %v197 = vperm.slane %v194, 0
    %v201 = vunpack.c.l.b16 %v192
    %v202 = vunpack.c.l.b16 %v193
    %v203 = vpack.c.b16 %v202, %v201
    %vm205 = vcmask 130048
    %v207 = vsel %vm205, %v195, 0
    %209 = vmatpush.bf16.msra.mxu0 0
    %210 = vmatpush.bf16.msra.mxu0 0
    %211 = vmatpush.bf16.msra.mxu0 0
    %212 = vmatpush.bf16.msra.mxu0 0
    %213 = vmatpush.bf16.msra.mxu0 0
    %214 = vmatpush.bf16.msra.mxu0 0
    %215 = vmatpush.bf16.msra.mxu0 0
    %216 = vmatpush.bf16.msra.mxu0 %v203
    %217 = vmatmul.bf16.gmra.mxu0 %v207
    %v218 = vpop.f32.mrf.mxu0
    %v219 = vadd.f32 %v197, %v218
    %v220 = vpop.f32.mrf.mxu0
    %221 = vdwg.mxu0
    %vm222 = vcmp.ge.f32.partialorder %v219, 0.0
    %v223 = vmul.f32 %v219, 0.01
    %v224 = vsel %vm222, %v219, %v223
    %v225 = vld [vmem:[#allocation7] sm:$0xf]
    %v226 = vld [vmem:[#allocation7 + $0x4] sm:$0xf]
    %v227 = vld [vmem:[#allocation7 + $0x8] sm:$0xf]
    %v228 = vld [vmem:[#allocation7 + $0xc] sm:$0xf]
    %v229 = vld [vmem:[#allocation7 + $0x10] sm:$0xf]
    %v230 = vld [vmem:[#allocation7 + $0x14] sm:$0xf]
    %v231 = vld [vmem:[#allocation7 + $0x18] sm:$0xf]
    %v232 = vld [vmem:[#allocation7 + $0x1c] sm:$0xf]
    %v233 = vld [vmem:[#allocation7 + $0x20] sm:$0xf]
    %v234 = vld [vmem:[#allocation7 + $0x24] sm:$0xf]
    %v235 = vld [vmem:[#allocation7 + $0x28] sm:$0xf]
    %v236 = vld [vmem:[#allocation7 + $0x2c] sm:$0xf]
    %v237 = vld [vmem:[#allocation7 + $0x30] sm:$0xf]
    %v238 = vld [vmem:[#allocation7 + $0x34] sm:$0xf]
    %v239 = vld [vmem:[#allocation7 + $0x38] sm:$0xf]
    %v240 = vld [vmem:[#allocation7 + $0x3c] sm:$0xf]
    %v241 = vld [vmem:[#allocation8] sm:$0x1]
    %v242 = vpack.c.bf16 %v224, %v224
    %v244 = vperm.slane %v241, 0
    %v262 = vunpack.c.l.b16 %v225
    %v263 = vunpack.c.l.b16 %v226
    %v264 = vunpack.c.l.b16 %v227
    %v265 = vunpack.c.l.b16 %v228
    %v266 = vunpack.c.l.b16 %v229
    %v267 = vunpack.c.l.b16 %v230
    %v268 = vunpack.c.l.b16 %v231
    %v269 = vunpack.c.l.b16 %v232
    %v270 = vunpack.c.l.b16 %v233
    %v271 = vunpack.c.l.b16 %v234
    %v272 = vunpack.c.l.b16 %v235
    %v273 = vunpack.c.l.b16 %v236
    %v274 = vunpack.c.l.b16 %v237
    %v275 = vunpack.c.l.b16 %v238
    %v276 = vunpack.c.l.b16 %v239
    %v277 = vunpack.c.l.b16 %v240
    %v278 = vpack.c.b16 %v263, %v262
    %v279 = vpack.c.b16 %v265, %v264
    %v280 = vpack.c.b16 %v267, %v266
    %v281 = vpack.c.b16 %v269, %v268
    %v282 = vpack.c.b16 %v271, %v270
    %v283 = vpack.c.b16 %v273, %v272
    %v284 = vpack.c.b16 %v275, %v274
    %v285 = vpack.c.b16 %v277, %v276
    %294 = vmatpush.bf16.msra.mxu0 %v285
    %295 = vmatpush.bf16.msra.mxu0 %v284
    %296 = vmatpush.bf16.msra.mxu0 %v283
    %297 = vmatpush.bf16.msra.mxu0 %v282
    %298 = vmatpush.bf16.msra.mxu0 %v281
    %299 = vmatpush.bf16.msra.mxu0 %v280
    %300 = vmatpush.bf16.msra.mxu0 %v279
    %301 = vmatpush.bf16.msra.mxu0 %v278
    %302 = vmatmul.bf16.gmra.mxu0 %v242
    %v303 = vpop.f32.mrf.mxu0
    %v304 = vadd.f32 %v244, %v303
    %v305 = vpop.f32.mrf.mxu0
    %306 = vdwg.mxu0
    %vm307 = vcmp.ge.f32.partialorder %v304, 0.0
    %v308 = vmul.f32 %v304, 0.01
    %v309 = vsel %vm307, %v304, %v308
    %v310 = vld [vmem:[#allocation10] sm:$0xf]
    %v311 = vld [vmem:[#allocation10 + $0x4] sm:$0xf]
    %v312 = vld [vmem:[#allocation10 + $0x8] sm:$0xf]
    %v313 = vld [vmem:[#allocation10 + $0xc] sm:$0xf]
    %v314 = vld [vmem:[#allocation10 + $0x10] sm:$0xf]
    %v315 = vld [vmem:[#allocation10 + $0x14] sm:$0xf]
    %v316 = vld [vmem:[#allocation10 + $0x18] sm:$0xf]
    %v317 = vld [vmem:[#allocation10 + $0x1c] sm:$0xf]
    %v318 = vld [vmem:[#allocation10 + $0x20] sm:$0xf]
    %v319 = vld [vmem:[#allocation10 + $0x24] sm:$0xf]
    %v320 = vld [vmem:[#allocation10 + $0x28] sm:$0xf]
    %v321 = vld [vmem:[#allocation10 + $0x2c] sm:$0xf]
    %v322 = vld [vmem:[#allocation10 + $0x30] sm:$0xf]
    %v323 = vld [vmem:[#allocation10 + $0x34] sm:$0xf]
    %v324 = vld [vmem:[#allocation10 + $0x38] sm:$0xf]
    %v325 = vld [vmem:[#allocation10 + $0x3c] sm:$0xf]
    %v326 = vld [vmem:[%s6] sm:$0x1]
    %v327 = vpack.c.bf16 %v309, %v309
    %v329 = vperm.slane %v326, 0
    %v347 = vunpack.c.l.b16 %v310
    %v348 = vunpack.c.l.b16 %v311
    %v349 = vunpack.c.l.b16 %v312
    %v350 = vunpack.c.l.b16 %v313
    %v351 = vunpack.c.l.b16 %v314
    %v352 = vunpack.c.l.b16 %v315
    %v353 = vunpack.c.l.b16 %v316
    %v354 = vunpack.c.l.b16 %v317
    %v355 = vunpack.c.l.b16 %v318
    %v356 = vunpack.c.l.b16 %v319
    %v357 = vunpack.c.l.b16 %v320
    %v358 = vunpack.c.l.b16 %v321
    %v359 = vunpack.c.l.b16 %v322
    %v360 = vunpack.c.l.b16 %v323
    %v361 = vunpack.c.l.b16 %v324
    %v362 = vunpack.c.l.b16 %v325
    %v363 = vpack.c.b16 %v348, %v347
    %v364 = vpack.c.b16 %v350, %v349
    %v365 = vpack.c.b16 %v352, %v351
    %v366 = vpack.c.b16 %v354, %v353
    %v367 = vpack.c.b16 %v356, %v355
    %v368 = vpack.c.b16 %v358, %v357
    %v369 = vpack.c.b16 %v360, %v359
    %v370 = vpack.c.b16 %v362, %v361
    %379 = vmatpush.bf16.msra.mxu0 %v370
    %380 = vmatpush.bf16.msra.mxu0 %v369
    %381 = vmatpush.bf16.msra.mxu0 %v368
    %382 = vmatpush.bf16.msra.mxu0 %v367
    %383 = vmatpush.bf16.msra.mxu0 %v366
    %384 = vmatpush.bf16.msra.mxu0 %v365
    %385 = vmatpush.bf16.msra.mxu0 %v364
    %386 = vmatpush.bf16.msra.mxu0 %v363
    %387 = vmatmul.bf16.gmra.mxu0 %v327
    %v388 = vpop.f32.mrf.mxu0
    %v389 = vadd.f32 %v329, %v388
    %v390 = vpop.f32.mrf.mxu0
    %391 = vdwg.mxu0
    %v392 = vld [vmem:[#allocation11] sm:$0xff]
    %v393 = vld [vmem:[#allocation11 + $0x8] sm:$0xff]
    %v394 = vld [vmem:[#allocation11 + $0x10] sm:$0xff]
    %v395 = vld [vmem:[#allocation11 + $0x18] sm:$0xff]
    %v396 = vld [vmem:[#allocation11 + $0x20] sm:$0xff]
    %v397 = vld [vmem:[#allocation11 + $0x28] sm:$0xff]
    %v398 = vld [vmem:[#allocation11 + $0x30] sm:$0xff]
    %v399 = vld [vmem:[#allocation11 + $0x38] sm:$0xff]
    %v400 = vld [vmem:[#allocation11 + $0x40] sm:$0xff]
    %v401 = vld [vmem:[#allocation11 + $0x48] sm:$0xff]
    %v402 = vld [vmem:[#allocation11 + $0x50] sm:$0xff]
    %v403 = vld [vmem:[#allocation11 + $0x58] sm:$0xff]
    %v404 = vld [vmem:[#allocation11 + $0x60] sm:$0xff]
    %v405 = vld [vmem:[#allocation11 + $0x68] sm:$0xff]
    %v406 = vld [vmem:[#allocation11 + $0x70] sm:$0xff]
    %v407 = vld [vmem:[#allocation11 + $0x78] sm:$0xff]
    %v408 = vld [vmem:[%s8] sm:$0x3]
    %v409 = vpack.c.bf16 %v389, %v389
    %v411 = vperm.slane %v408, 0
    %v412 = vperm.slane %v408, 1
    %v431 = vunpack.c.l.b16 %v392
    %v432 = vunpack.c.h.b16 %v392
    %v433 = vunpack.c.l.b16 %v393
    %v434 = vunpack.c.h.b16 %v393
    %v435 = vunpack.c.l.b16 %v394
    %v436 = vunpack.c.h.b16 %v394
    %v437 = vunpack.c.l.b16 %v395
    %v438 = vunpack.c.h.b16 %v395
    %v439 = vunpack.c.l.b16 %v396
    %v440 = vunpack.c.h.b16 %v396
    %v441 = vunpack.c.l.b16 %v397
    %v442 = vunpack.c.h.b16 %v397
    %v443 = vunpack.c.l.b16 %v398
    %v444 = vunpack.c.h.b16 %v398
    %v445 = vunpack.c.l.b16 %v399
    %v446 = vunpack.c.h.b16 %v399
    %v447 = vunpack.c.l.b16 %v400
    %v448 = vunpack.c.h.b16 %v400
    %v449 = vunpack.c.l.b16 %v401
    %v450 = vunpack.c.h.b16 %v401
    %v451 = vunpack.c.l.b16 %v402
    %v452 = vunpack.c.h.b16 %v402
    %v453 = vunpack.c.l.b16 %v403
    %v454 = vunpack.c.h.b16 %v403
    %v455 = vunpack.c.l.b16 %v404
    %v456 = vunpack.c.h.b16 %v404
    %v457 = vunpack.c.l.b16 %v405
    %v458 = vunpack.c.h.b16 %v405
    %v459 = vunpack.c.l.b16 %v406
    %v460 = vunpack.c.h.b16 %v406
    %v461 = vunpack.c.l.b16 %v407
    %v462 = vunpack.c.h.b16 %v407
    %v463 = vpack.c.b16 %v433, %v431
    %v464 = vpack.c.b16 %v434, %v432
    %v465 = vpack.c.b16 %v437, %v435
    %v466 = vpack.c.b16 %v438, %v436
    %v467 = vpack.c.b16 %v441, %v439
    %v468 = vpack.c.b16 %v442, %v440
    %v469 = vpack.c.b16 %v445, %v443
    %v470 = vpack.c.b16 %v446, %v444
    %v471 = vpack.c.b16 %v449, %v447
    %v472 = vpack.c.b16 %v450, %v448
    %v473 = vpack.c.b16 %v453, %v451
    %v474 = vpack.c.b16 %v454, %v452
    %v475 = vpack.c.b16 %v457, %v455
    %v476 = vpack.c.b16 %v458, %v456
    %v477 = vpack.c.b16 %v461, %v459
    %v478 = vpack.c.b16 %v462, %v460
    %495 = vmatpush.bf16.msra.mxu0 %v477
    %496 = vmatpush.bf16.msra.mxu0 %v475
    %497 = vmatpush.bf16.msra.mxu0 %v473
    %498 = vmatpush.bf16.msra.mxu0 %v471
    %499 = vmatpush.bf16.msra.mxu0 %v469
    %500 = vmatpush.bf16.msra.mxu0 %v467
    %501 = vmatpush.bf16.msra.mxu0 %v465
    %502 = vmatpush.bf16.msra.mxu0 %v463
    %503 = vmatmul.bf16.gmra.mxu0 %v409
    %v504 = vpop.f32.mrf.mxu0
    %v505 = vadd.f32 %v411, %v504
    %v506 = vpop.f32.mrf.mxu0
    %507 = vdwg.mxu0
    %508 = vmatpush.bf16.msra.mxu0 %v478
    %509 = vmatpush.bf16.msra.mxu0 %v476
    %510 = vmatpush.bf16.msra.mxu0 %v474
    %511 = vmatpush.bf16.msra.mxu0 %v472
    %512 = vmatpush.bf16.msra.mxu0 %v470
    %513 = vmatpush.bf16.msra.mxu0 %v468
    %514 = vmatpush.bf16.msra.mxu0 %v466
    %515 = vmatpush.bf16.msra.mxu0 %v464
    %516 = vmatmul.bf16.gmra.mxu0 %v409
    %v517 = vpop.f32.mrf.mxu0
    %v518 = vadd.f32 %v412, %v517
    %v519 = vpop.f32.mrf.mxu0
    %520 = vdwg.mxu0
    %vm521 = vcmp.ge.f32.partialorder %v505, 0.0
    %vm522 = vcmp.ge.f32.partialorder %v518, 0.0
    %v523 = vmul.f32 %v505, 0.01
    %v524 = vmul.f32 %v518, 0.01
    %v525 = vsel %vm521, %v505, %v523
    %v526 = vsel %vm522, %v518, %v524
    %v527 = vld [vmem:[#allocation13] sm:$0xf]
    %v528 = vld [vmem:[#allocation13 + $0x4] sm:$0xf]
    %v529 = vld [vmem:[#allocation13 + $0x8] sm:$0xf]
    %v530 = vld [vmem:[#allocation13 + $0xc] sm:$0xf]
    %v531 = vld [vmem:[#allocation13 + $0x10] sm:$0xf]
    %v532 = vld [vmem:[#allocation13 + $0x14] sm:$0xf]
    %v533 = vld [vmem:[#allocation13 + $0x18] sm:$0xf]
    %v534 = vld [vmem:[#allocation13 + $0x1c] sm:$0xf]
    %v535 = vld [vmem:[#allocation13 + $0x20] sm:$0xf]
    %v536 = vld [vmem:[#allocation13 + $0x24] sm:$0xf]
    %v537 = vld [vmem:[#allocation13 + $0x28] sm:$0xf]
    %v538 = vld [vmem:[#allocation13 + $0x2c] sm:$0xf]
    %v539 = vld [vmem:[#allocation13 + $0x30] sm:$0xf]
    %v540 = vld [vmem:[#allocation13 + $0x34] sm:$0xf]
    %v541 = vld [vmem:[#allocation13 + $0x38] sm:$0xf]
    %v542 = vld [vmem:[#allocation13 + $0x3c] sm:$0xf]
    %v543 = vld [vmem:[%s10] sm:$0x1]
    %v544 = vpack.c.bf16 %v526, %v526
    %v546 = vperm.slane %v543, 0
    %v564 = vunpack.c.l.b16 %v527
    %v565 = vunpack.c.l.b16 %v528
    %v566 = vunpack.c.l.b16 %v529
    %v567 = vunpack.c.l.b16 %v530
    %v568 = vunpack.c.l.b16 %v531
    %v569 = vunpack.c.l.b16 %v532
    %v570 = vunpack.c.l.b16 %v533
    %v571 = vunpack.c.l.b16 %v534
    %v572 = vunpack.c.l.b16 %v535
    %v573 = vunpack.c.l.b16 %v536
    %v574 = vunpack.c.l.b16 %v537
    %v575 = vunpack.c.l.b16 %v538
    %v576 = vunpack.c.l.b16 %v539
    %v577 = vunpack.c.l.b16 %v540
    %v578 = vunpack.c.l.b16 %v541
    %v579 = vunpack.c.l.b16 %v542
    %v580 = vpack.c.b16 %v565, %v564
    %v581 = vpack.c.b16 %v567, %v566
    %v582 = vpack.c.b16 %v569, %v568
    %v583 = vpack.c.b16 %v571, %v570
    %v584 = vpack.c.b16 %v573, %v572
    %v585 = vpack.c.b16 %v575, %v574
    %v586 = vpack.c.b16 %v577, %v576
    %v587 = vpack.c.b16 %v579, %v578
    %596 = vmatpush.bf16.msra.mxu0 %v587
    %597 = vmatpush.bf16.msra.mxu0 %v586
    %598 = vmatpush.bf16.msra.mxu0 %v585
    %599 = vmatpush.bf16.msra.mxu0 %v584
    %600 = vmatpush.bf16.msra.mxu0 %v583
    %601 = vmatpush.bf16.msra.mxu0 %v582
    %602 = vmatpush.bf16.msra.mxu0 %v581
    %603 = vmatpush.bf16.msra.mxu0 %v580
    %604 = vmatmul.bf16.gmra.mxu0 %v544
    %v605 = vpop.f32.mrf.mxu0
    %v606 = vadd.f32 %v546, %v605
    %v607 = vpop.f32.mrf.mxu0
    %608 = vdwg.mxu0
    %609 = vst [vmem:[#allocation18] sm:$0xff] %v606
    %v610 = vld [vmem:[#allocation14] sm:$0xf]
    %v611 = vld [vmem:[#allocation14 + $0x4] sm:$0xf]
    %v612 = vld [vmem:[#allocation14 + $0x8] sm:$0xf]
    %v613 = vld [vmem:[#allocation14 + $0xc] sm:$0xf]
    %v614 = vld [vmem:[#allocation14 + $0x10] sm:$0xf]
    %v615 = vld [vmem:[#allocation14 + $0x14] sm:$0xf]
    %v616 = vld [vmem:[#allocation14 + $0x18] sm:$0xf]
    %v617 = vld [vmem:[#allocation14 + $0x1c] sm:$0xf]
    %v618 = vld [vmem:[#allocation14 + $0x20] sm:$0xf]
    %v619 = vld [vmem:[#allocation14 + $0x24] sm:$0xf]
    %v620 = vld [vmem:[#allocation14 + $0x28] sm:$0xf]
    %v621 = vld [vmem:[#allocation14 + $0x2c] sm:$0xf]
    %v622 = vld [vmem:[#allocation14 + $0x30] sm:$0xf]
    %v623 = vld [vmem:[#allocation14 + $0x34] sm:$0xf]
    %v624 = vld [vmem:[#allocation14 + $0x38] sm:$0xf]
    %v625 = vld [vmem:[#allocation14 + $0x3c] sm:$0xf]
    %v626 = vld [vmem:[%s12] sm:$0x1]
    %v627 = vpack.c.bf16 %v525, %v525
    %v629 = vperm.slane %v626, 0
    %v647 = vunpack.c.l.b16 %v610
    %v648 = vunpack.c.l.b16 %v611
    %v649 = vunpack.c.l.b16 %v612
    %v650 = vunpack.c.l.b16 %v613
    %v651 = vunpack.c.l.b16 %v614
    %v652 = vunpack.c.l.b16 %v615
    %v653 = vunpack.c.l.b16 %v616
    %v654 = vunpack.c.l.b16 %v617
    %v655 = vunpack.c.l.b16 %v618
    %v656 = vunpack.c.l.b16 %v619
    %v657 = vunpack.c.l.b16 %v620
    %v658 = vunpack.c.l.b16 %v621
    %v659 = vunpack.c.l.b16 %v622
    %v660 = vunpack.c.l.b16 %v623
    %v661 = vunpack.c.l.b16 %v624
    %v662 = vunpack.c.l.b16 %v625
    %v663 = vpack.c.b16 %v648, %v647
    %v664 = vpack.c.b16 %v650, %v649
    %v665 = vpack.c.b16 %v652, %v651
    %v666 = vpack.c.b16 %v654, %v653
    %v667 = vpack.c.b16 %v656, %v655
    %v668 = vpack.c.b16 %v658, %v657
    %v669 = vpack.c.b16 %v660, %v659
    %v670 = vpack.c.b16 %v662, %v661
    %679 = vmatpush.bf16.msra.mxu0 %v670
    %680 = vmatpush.bf16.msra.mxu0 %v669
    %681 = vmatpush.bf16.msra.mxu0 %v668
    %682 = vmatpush.bf16.msra.mxu0 %v667
    %683 = vmatpush.bf16.msra.mxu0 %v666
    %684 = vmatpush.bf16.msra.mxu0 %v665
    %685 = vmatpush.bf16.msra.mxu0 %v664
    %686 = vmatpush.bf16.msra.mxu0 %v663
    %687 = vmatmul.bf16.gmra.mxu0 %v627
    %v688 = vpop.f32.mrf.mxu0
    %v689 = vadd.f32 %v629, %v688
    %v690 = vpop.f32.mrf.mxu0
    %691 = vdwg.mxu0
    %vm692 = vcmp.ge.f32.partialorder %v689, 0.0
    %v693 = vmul.f32 %v689, 0.01
    %v694 = vsel %vm692, %v689, %v693
    %v695 = vld [vmem:[#allocation16] sm:$0xf]
    %v696 = vld [vmem:[#allocation16 + $0x4] sm:$0xf]
    %v697 = vld [vmem:[#allocation16 + $0x8] sm:$0xf]
    %v698 = vld [vmem:[#allocation16 + $0xc] sm:$0xf]
    %v699 = vld [vmem:[#allocation16 + $0x10] sm:$0xf]
    %v700 = vld [vmem:[#allocation16 + $0x14] sm:$0xf]
    %v701 = vld [vmem:[#allocation16 + $0x18] sm:$0xf]
    %v702 = vld [vmem:[#allocation16 + $0x1c] sm:$0xf]
    %v703 = vld [vmem:[#allocation16 + $0x20] sm:$0xf]
    %v704 = vld [vmem:[#allocation16 + $0x24] sm:$0xf]
    %v705 = vld [vmem:[#allocation16 + $0x28] sm:$0xf]
    %v706 = vld [vmem:[#allocation16 + $0x2c] sm:$0xf]
    %v707 = vld [vmem:[#allocation16 + $0x30] sm:$0xf]
    %v708 = vld [vmem:[#allocation16 + $0x34] sm:$0xf]
    %v709 = vld [vmem:[#allocation16 + $0x38] sm:$0xf]
    %v710 = vld [vmem:[#allocation16 + $0x3c] sm:$0xf]
    %v711 = vld [vmem:[%s14] sm:$0x1]
    %v712 = vpack.c.bf16 %v694, %v694
    %v714 = vperm.slane %v711, 0
    %v732 = vunpack.c.l.b16 %v695
    %v733 = vunpack.c.l.b16 %v696
    %v734 = vunpack.c.l.b16 %v697
    %v735 = vunpack.c.l.b16 %v698
    %v736 = vunpack.c.l.b16 %v699
    %v737 = vunpack.c.l.b16 %v700
    %v738 = vunpack.c.l.b16 %v701
    %v739 = vunpack.c.l.b16 %v702
    %v740 = vunpack.c.l.b16 %v703
    %v741 = vunpack.c.l.b16 %v704
    %v742 = vunpack.c.l.b16 %v705
    %v743 = vunpack.c.l.b16 %v706
    %v744 = vunpack.c.l.b16 %v707
    %v745 = vunpack.c.l.b16 %v708
    %v746 = vunpack.c.l.b16 %v709
    %v747 = vunpack.c.l.b16 %v710
    %v748 = vpack.c.b16 %v733, %v732
    %v749 = vpack.c.b16 %v735, %v734
    %v750 = vpack.c.b16 %v737, %v736
    %v751 = vpack.c.b16 %v739, %v738
    %v752 = vpack.c.b16 %v741, %v740
    %v753 = vpack.c.b16 %v743, %v742
    %v754 = vpack.c.b16 %v745, %v744
    %v755 = vpack.c.b16 %v747, %v746
    %764 = vmatpush.bf16.msra.mxu0 %v755
    %765 = vmatpush.bf16.msra.mxu0 %v754
    %766 = vmatpush.bf16.msra.mxu0 %v753
    %767 = vmatpush.bf16.msra.mxu0 %v752
    %768 = vmatpush.bf16.msra.mxu0 %v751
    %769 = vmatpush.bf16.msra.mxu0 %v750
    %770 = vmatpush.bf16.msra.mxu0 %v749
    %771 = vmatpush.bf16.msra.mxu0 %v748
    %772 = vmatmul.bf16.gmra.mxu0 %v712
    %v773 = vpop.f32.mrf.mxu0
    %v774 = vadd.f32 %v714, %v773
    %v775 = vpop.f32.mrf.mxu0
    %776 = vdwg.mxu0
    %777 = vst [vmem:[#allocation17] sm:$0xff] %v774
    // Predicated region
    $region98: #{tpu_custom_call.1} parent=1 // pred_check
      _
    $region99: #{tpu_custom_call.1} parent=1 // pred_check_branch
      %779 = sbr.rel (0) target = $region101
    $region100: #{tpu_custom_call.1} parent=1 // pred_region
      %781 = vsyncadd [#allocation4], 0
      %s783 = sshll.u32 [#allocation17], 4
      %s784 = int_to_ptr.vmem [resolvable:$true] %s783
      %s785 = sshll.u32 %s15, 4
      %s786 = int_to_ptr.hbm [resolvable:$true] %s785
      %788 = dma.vmem_to_hbm [thread:$0]  %s784, 128, %s786, [#allocation4]
    $region101: #{tpu_custom_call.1} parent=1 // pred_fallthru
      _
    // Predicated region
    $region102: #{tpu_custom_call.1} parent=1 // pred_check
      _
    $region103: #{tpu_custom_call.1} parent=1 // pred_check_branch
      %790 = sbr.rel (0) target = $region105
    $region104: #{tpu_custom_call.1} parent=1 // pred_region
      %792 = vsyncadd [#allocation19], 0
      %s794 = sshll.u32 [#allocation18], 4
      %s795 = int_to_ptr.vmem [resolvable:$true] %s794
      %s796 = sshll.u32 %s16, 4
      %s797 = int_to_ptr.hbm [resolvable:$true] %s796
      %799 = dma.vmem_to_hbm [thread:$0]  %s795, 128, %s797, [#allocation19]
    $region105: #{tpu_custom_call.1} parent=1 // pred_fallthru
      _
    // Predicated region
    $region106: #{tpu_custom_call.1} parent=1 // pred_check
      _
    $region107: #{tpu_custom_call.1} parent=1 // pred_check_branch
      %801 = sbr.rel (0) target = $region109
    $region108: #{tpu_custom_call.1} parent=1 // pred_region
      %803 = dma.done [#allocation4], 128
    $region109: #{tpu_custom_call.1} parent=1 // pred_fallthru
      _
    // Predicated region
    $region110: #{tpu_custom_call.1} parent=1 // pred_check
      _
    $region111: #{tpu_custom_call.1} parent=1 // pred_check_branch
      %805 = sbr.rel (0) target = $region113
    $region112: #{tpu_custom_call.1} parent=1 // pred_region
      %807 = dma.done [#allocation19], 128
    $region113: #{tpu_custom_call.1} parent=1 // pred_fallthru
      _
    %808 = vsyncpa [#allocation3], 1
    %809 = vsyncpa [#allocation6], 1
    %810 = vsyncpa [#allocation9], 1
    %811 = vsyncpa [#allocation12], 1
    %812 = vsyncpa [#allocation15], 1
    %813 = vsyncpa [#allocation4], 1
    %814 = vsyncpa [#allocation19], 1

</llo_original>
